<compile_context>
chip_gen: v5e
topology: v5e:2x2
jax: 0.10.0
libtpu: 0.0.40
codegen_flags: <defaults>
</compile_context>

<pallas_src>
import jax
import jax.numpy as jnp
from jax.experimental import pallas as pl
from jax.experimental.pallas import tpu as pltpu


def _decoder_kernel(x_ref, w1_ref, b1_ref, w2_ref, b2_ref, o_ref):
    # x_ref: (tm, F)  [compute dtype]   w1_ref: (F, H)   b1_ref: (1, H) f32
    # w2_ref: (H, F)                    b2_ref: (1, F) f32
    # o_ref: (tm, F)  [x dtype]
    # Both matmuls accumulate in f32 on the MXU; bias + ReLU stay in f32 (VPU).
    h = jnp.dot(x_ref[...], w1_ref[...], preferred_element_type=jnp.float32)
    h = jnp.maximum(h + b1_ref[...], 0.0)          # relu(mlp1(x)), f32
    h = h.astype(w2_ref.dtype)                     # back to MXU compute dtype
    y = jnp.dot(h, w2_ref[...], preferred_element_type=jnp.float32)
    y = jnp.maximum(y + b2_ref[...], 0.0)          # relu(mlp2(h)), f32
    # NOTE: at tm>=512 with large H, stage `h` in a pltpu.VMEM((tm, H), f32)
    # scratch to bound vreg pressure; unnecessary at these tile sizes.
    o_ref[...] = y.astype(o_ref.dtype)


def _pick_tm(B):
    """Batch tile: full MXU rows (>=128) and >=2 grid steps when possible
    (feeds both v7x TensorCores); otherwise the largest clean divisor."""
    for cand in (256, 512, 128):
        if B % cand == 0 and B // cand >= 2:
            return cand
    for cand in (512, 256, 128, 64, 32, 16, 8):
        if B % cand == 0:
            return cand
    return B  # tiny batch: one full-batch tile (full-extent block is legal)


def sample_decoder(x, w1, b1, w2, b2, *, tm=None, compute_dtype=jnp.bfloat16):
    """Fused forward: relu(relu(x @ w1 + b1) @ w2 + b2).

    x: (B, F); w1: (F, H); b1: (H,); w2: (H, F); b2: (F,).
    Weights are pre-transposed relative to PyTorch nn.Linear's (out, in).
    """
    B, F = x.shape
    H = w1.shape[1]
    if tm is None:
        tm = _pick_tm(B)
    assert B % tm == 0, f"batch {B} must be divisible by batch tile {tm}"

    # MXU operands in the (narrower) compute dtype; biases / epilogue in f32.
    x_c = x.astype(compute_dtype)
    w1_c = w1.astype(compute_dtype)
    w2_c = w2.astype(compute_dtype)
    b1_2d = b1.reshape(1, H).astype(jnp.float32)
    b2_2d = b2.reshape(1, F).astype(jnp.float32)

    itemsize = jnp.dtype(compute_dtype).itemsize
    cost = pl.CostEstimate(
        flops=4 * B * F * H,                       # two (B,F)x(F,H)-sized matmuls
        transcendentals=0,
        bytes_accessed=(B * F * itemsize           # x
                        + 2 * F * H * itemsize     # w1 + w2
                        + (H + F) * 4              # biases (f32)
                        + B * F * jnp.dtype(x.dtype).itemsize),  # output
    )

    def build(single_buffer_weights):
        def const_spec(shape):
            # Grid-invariant operand: fetched once, kept VMEM-resident.
            idx_map = lambda i, _n=len(shape): (0,) * _n
            if single_buffer_weights:
                # Single-buffer so the pipeline doesn't allocate a second,
                # never-refetched copy (halves weight VMEM footprint).
                return pl.BlockSpec(shape, idx_map, pipeline_mode=pl.Buffered(1))
            return pl.BlockSpec(shape, idx_map)

        return pl.pallas_call(
            _decoder_kernel,
            out_shape=jax.ShapeDtypeStruct((B, F), x.dtype),
            grid_spec=pltpu.PrefetchScalarGridSpec(
                num_scalar_prefetch=0,
                grid=(B // tm,),
                in_specs=[
                    pl.BlockSpec((tm, F), lambda i: (i, 0)),   # x tile (pipelined)
                    const_spec((F, H)),                        # w1 (resident)
                    const_spec((1, H)),                        # b1
                    const_spec((H, F)),                        # w2 (resident)
                    const_spec((1, F)),                        # b2
                ],
                out_specs=pl.BlockSpec((tm, F), lambda i: (i, 0)),
            ),
            compiler_params=pltpu.CompilerParams(
                dimension_semantics=("parallel",),
                # Explicit budget: well above this kernel's needs, and within
                # the scoped-VMEM ceiling on v5e/v6e/v7x alike.
                vmem_limit_bytes=32 * 1024 * 1024,
            ),
            cost_estimate=cost,
        )

    last_err = None
    for single_buffer_weights in (True, False):
        try:
            return build(single_buffer_weights)(x_c, w1_c, b1_2d, w2_c, b2_2d)
        except Exception as err:  # pipeline_mode support varies across JAX builds
            last_err = err
    raise last_err


def reference(x, w1, b1, w2, b2):
    h = jnp.maximum(x @ w1 + b1, 0.0)
    return jnp.maximum(h @ w2 + b2, 0.0)


if __name__ == "__main__":
    # Shapes consistent with SampleDecoder(feature_size, hidden_size); batch is
    # sized so the default tiling gives full 128-row MXU tiles and a 2-step
    # 'parallel' grid (both v7x TensorCores busy). Still tiny arrays (<300 KB).
    batch, feature_size, hidden_size = 256, 128, 256

    key = jax.random.PRNGKey(0)
    kx, kw1, kb1, kw2, kb2 = jax.random.split(key, 5)

    x = jax.random.normal(kx, (batch, feature_size), dtype=jnp.float32)
    # PyTorch nn.Linear weights (W1: (H, F), W2: (F, H)) stored pre-transposed.
    w1 = jax.random.normal(kw1, (feature_size, hidden_size), jnp.float32) * 0.05
    b1 = jax.random.normal(kb1, (hidden_size,), jnp.float32) * 0.05
    w2 = jax.random.normal(kw2, (hidden_size, feature_size), jnp.float32) * 0.05
    b2 = jax.random.normal(kb2, (feature_size,), jnp.float32) * 0.05

    out = sample_decoder(x, w1, b1, w2, b2)          # bf16 MXU path (default)
    jax.block_until_ready(out)

    ref = reference(x, w1, b1, w2, b2)
    assert out.shape == (batch, feature_size)
    assert out.dtype == x.dtype
    # Tolerance loosened for bf16 MXU operands (f32 accumulation).
    assert jnp.allclose(out, ref, atol=5e-2, rtol=5e-2), "bf16 path mismatch"

    # Exact-precision path keeps a tight tolerance.
    out_f32 = sample_decoder(x, w1, b1, w2, b2, compute_dtype=jnp.float32)
    jax.block_until_ready(out_f32)
    assert jnp.allclose(out_f32, ref, atol=1e-5, rtol=1e-5), "f32 path mismatch"

    print("KERNEL_OK")
</pallas_src>

<mosaic_0001>
module attributes {stable_mosaic.version = 11 : i64} {
  func.func @_decoder_kernel(%arg0: i32, %arg1: memref<128x128xbf16, #tpu.memory_space<vmem>>, %arg2: memref<128x256xbf16, #tpu.memory_space<vmem>>, %arg3: memref<1x256xf32, #tpu.memory_space<vmem>>, %arg4: memref<256x128xbf16, #tpu.memory_space<vmem>>, %arg5: memref<1x128xf32, #tpu.memory_space<vmem>>, %arg6: memref<128x128xf32, #tpu.memory_space<vmem>>) attributes {dimension_semantics = [#tpu.dimension_semantics<parallel>], iteration_bounds = array<i64: 2>, scalar_prefetch = 0 : i64, scratch_operands = 0 : i64, tpu.core_type = #tpu.core_type<tc>, window_params = [{transform_indices = @transform_0, window_bounds = array<i64: 128, 128>}, {pipeline_mode = #tpu.pipeline_mode<synchronous>, transform_indices = @transform_1, window_bounds = array<i64: 128, 256>}, {pipeline_mode = #tpu.pipeline_mode<synchronous>, transform_indices = @transform_2, window_bounds = array<i64: 1, 256>}, {pipeline_mode = #tpu.pipeline_mode<synchronous>, transform_indices = @transform_3, window_bounds = array<i64: 256, 128>}, {pipeline_mode = #tpu.pipeline_mode<synchronous>, transform_indices = @transform_4, window_bounds = array<i64: 1, 128>}, {transform_indices = @transform_5, window_bounds = array<i64: 128, 128>}]} {
    %c0 = arith.constant 0 : index
    %c0_0 = arith.constant 0 : index
    %0 = vector.load %arg1[%c0, %c0_0] : memref<128x128xbf16, #tpu.memory_space<vmem>>, vector<128x128xbf16>
    %c0_1 = arith.constant 0 : index
    %c0_2 = arith.constant 0 : index
    %1 = vector.load %arg2[%c0_1, %c0_2] : memref<128x256xbf16, #tpu.memory_space<vmem>>, vector<128x256xbf16>
    %cst = arith.constant dense<0.000000e+00> : vector<128x256xf32>
    %2 = tpu.matmul %0, %1, %cst {dimension_numbers = #tpu.dot_dimension_numbers<[1], [0], [0], [1], [0, 0, 1, 1], [], []>} : vector<128x128xbf16>, vector<128x256xbf16>, vector<128x256xf32> -> vector<128x256xf32>
    %c0_3 = arith.constant 0 : index
    %c0_4 = arith.constant 0 : index
    %3 = vector.load %arg3[%c0_3, %c0_4] : memref<1x256xf32, #tpu.memory_space<vmem>>, vector<1x256xf32>
    %4 = vector.broadcast %3 : vector<1x256xf32> to vector<128x256xf32>
    %5 = arith.addf %2, %4 : vector<128x256xf32>
    %cst_5 = arith.constant 0.000000e+00 : f32
    %6 = vector.broadcast %cst_5 : f32 to vector<128x256xf32>
    %7 = arith.maximumf %5, %6 : vector<128x256xf32>
    %8 = arith.truncf %7 : vector<128x256xf32> to vector<128x256xbf16>
    %c0_6 = arith.constant 0 : index
    %c0_7 = arith.constant 0 : index
    %9 = vector.load %arg4[%c0_6, %c0_7] : memref<256x128xbf16, #tpu.memory_space<vmem>>, vector<256x128xbf16>
    %cst_8 = arith.constant dense<0.000000e+00> : vector<128x128xf32>
    %10 = tpu.matmul %8, %9, %cst_8 {dimension_numbers = #tpu.dot_dimension_numbers<[1], [0], [0], [1], [0, 0, 1, 1], [], []>} : vector<128x256xbf16>, vector<256x128xbf16>, vector<128x128xf32> -> vector<128x128xf32>
    %c0_9 = arith.constant 0 : index
    %c0_10 = arith.constant 0 : index
    %11 = vector.load %arg5[%c0_9, %c0_10] : memref<1x128xf32, #tpu.memory_space<vmem>>, vector<1x128xf32>
    %12 = vector.broadcast %11 : vector<1x128xf32> to vector<128x128xf32>
    %13 = arith.addf %10, %12 : vector<128x128xf32>
    %cst_11 = arith.constant 0.000000e+00 : f32
    %14 = vector.broadcast %cst_11 : f32 to vector<128x128xf32>
    %15 = arith.maximumf %13, %14 : vector<128x128xf32>
    %c0_12 = arith.constant 0 : index
    %c0_13 = arith.constant 0 : index
    %16 = vector.load %arg6[%c0_12, %c0_13] : memref<128x128xf32, #tpu.memory_space<vmem>>, vector<128x128xf32>
    tpu.vector_store %arg6[%c0_12, %c0_13], %15 {strides = array<i32>} : memref<128x128xf32, #tpu.memory_space<vmem>>, vector<128x128xf32>,
    return
  }
  func.func @transform_0(%arg0: i32) -> (i32, i32) {
    %c0_i32 = arith.constant 0 : i32
    %c0_i32_0 = arith.constant 0 : i32
    return %arg0, %c0_i32 : i32, i32
  }
  func.func @transform_1(%arg0: i32) -> (i32, i32) {
    %c0_i32 = arith.constant 0 : i32
    %c0_i32_0 = arith.constant 0 : i32
    %c0_i32_1 = arith.constant 0 : i32
    return %c0_i32, %c0_i32_0 : i32, i32
  }
  func.func @transform_2(%arg0: i32) -> (i32, i32) {
    %c0_i32 = arith.constant 0 : i32
    %c0_i32_0 = arith.constant 0 : i32
    %c0_i32_1 = arith.constant 0 : i32
    return %c0_i32, %c0_i32_0 : i32, i32
  }
  func.func @transform_3(%arg0: i32) -> (i32, i32) {
    %c0_i32 = arith.constant 0 : i32
    %c0_i32_0 = arith.constant 0 : i32
    %c0_i32_1 = arith.constant 0 : i32
    return %c0_i32, %c0_i32_0 : i32, i32
  }
  func.func @transform_4(%arg0: i32) -> (i32, i32) {
    %c0_i32 = arith.constant 0 : i32
    %c0_i32_0 = arith.constant 0 : i32
    %c0_i32_1 = arith.constant 0 : i32
    return %c0_i32, %c0_i32_0 : i32, i32
  }
  func.func @transform_5(%arg0: i32) -> (i32, i32) {
    %c0_i32 = arith.constant 0 : i32
    %c0_i32_0 = arith.constant 0 : i32
    return %arg0, %c0_i32 : i32, i32
  }
}

module attributes {stable_mosaic.version = 11 : i64} {
  func.func @_decoder_kernel(%arg0: i32, %arg1: memref<128x128xbf16, #tpu.memory_space<vmem>>, %arg2: memref<128x256xbf16, #tpu.memory_space<vmem>>, %arg3: memref<1x256xf32, #tpu.memory_space<vmem>>, %arg4: memref<256x128xbf16, #tpu.memory_space<vmem>>, %arg5: memref<1x128xf32, #tpu.memory_space<vmem>>, %arg6: memref<128x128xf32, #tpu.memory_space<vmem>>) attributes {dimension_semantics = [#tpu.dimension_semantics<parallel>], iteration_bounds = array<i64: 2>, scalar_prefetch = 0 : i64, scratch_operands = 0 : i64, tpu.core_type = #tpu.core_type<tc>, window_params = [{transform_indices = @transform_0, window_bounds = array<i64: 128, 128>}, {pipeline_mode = #tpu.pipeline_mode<synchronous>, transform_indices = @transform_1, window_bounds = array<i64: 128, 256>}, {pipeline_mode = #tpu.pipeline_mode<synchronous>, transform_indices = @transform_2, window_bounds = array<i64: 1, 256>}, {pipeline_mode = #tpu.pipeline_mode<synchronous>, transform_indices = @transform_3, window_bounds = array<i64: 256, 128>}, {pipeline_mode = #tpu.pipeline_mode<synchronous>, transform_indices = @transform_4, window_bounds = array<i64: 1, 128>}, {transform_indices = @transform_5, window_bounds = array<i64: 128, 128>}]} {
    %c0 = arith.constant 0 : index
    %c0_0 = arith.constant 0 : index
    %0 = vector.load %arg1[%c0, %c0_0] : memref<128x128xbf16, #tpu.memory_space<vmem>>, vector<128x128xbf16>
    %c0_1 = arith.constant 0 : index
    %c0_2 = arith.constant 0 : index
    %1 = vector.load %arg2[%c0_1, %c0_2] : memref<128x256xbf16, #tpu.memory_space<vmem>>, vector<128x256xbf16>
    %cst = arith.constant dense<0.000000e+00> : vector<128x256xf32>
    %2 = tpu.matmul %0, %1, %cst {dimension_numbers = #tpu.dot_dimension_numbers<[1], [0], [0], [1], [0, 0, 1, 1], [], []>} : vector<128x128xbf16>, vector<128x256xbf16>, vector<128x256xf32> -> vector<128x256xf32>
    %c0_3 = arith.constant 0 : index
    %c0_4 = arith.constant 0 : index
    %3 = vector.load %arg3[%c0_3, %c0_4] : memref<1x256xf32, #tpu.memory_space<vmem>>, vector<1x256xf32>
    %4 = vector.broadcast %3 : vector<1x256xf32> to vector<128x256xf32>
    %5 = arith.addf %2, %4 : vector<128x256xf32>
    %cst_5 = arith.constant 0.000000e+00 : f32
    %6 = vector.broadcast %cst_5 : f32 to vector<128x256xf32>
    %7 = arith.maximumf %5, %6 : vector<128x256xf32>
    %8 = arith.truncf %7 : vector<128x256xf32> to vector<128x256xbf16>
    %c0_6 = arith.constant 0 : index
    %c0_7 = arith.constant 0 : index
    %9 = vector.load %arg4[%c0_6, %c0_7] : memref<256x128xbf16, #tpu.memory_space<vmem>>, vector<256x128xbf16>
    %cst_8 = arith.constant dense<0.000000e+00> : vector<128x128xf32>
    %10 = tpu.matmul %8, %9, %cst_8 {dimension_numbers = #tpu.dot_dimension_numbers<[1], [0], [0], [1], [0, 0, 1, 1], [], []>} : vector<128x256xbf16>, vector<256x128xbf16>, vector<128x128xf32> -> vector<128x128xf32>
    %c0_9 = arith.constant 0 : index
    %c0_10 = arith.constant 0 : index
    %11 = vector.load %arg5[%c0_9, %c0_10] : memref<1x128xf32, #tpu.memory_space<vmem>>, vector<1x128xf32>
    %12 = vector.broadcast %11 : vector<1x128xf32> to vector<128x128xf32>
    %13 = arith.addf %10, %12 : vector<128x128xf32>
    %cst_11 = arith.constant 0.000000e+00 : f32
    %14 = vector.broadcast %cst_11 : f32 to vector<128x128xf32>
    %15 = arith.maximumf %13, %14 : vector<128x128xf32>
    %c0_12 = arith.constant 0 : index
    %c0_13 = arith.constant 0 : index
    %16 = vector.load %arg6[%c0_12, %c0_13] : memref<128x128xf32, #tpu.memory_space<vmem>>, vector<128x128xf32>
    tpu.vector_store %arg6[%c0_12, %c0_13], %15 {strides = array<i32>} : memref<128x128xf32, #tpu.memory_space<vmem>>, vector<128x128xf32>,
    return
  }
  func.func @transform_0(%arg0: i32) -> (i32, i32) {
    %c0_i32 = arith.constant 0 : i32
    %c0_i32_0 = arith.constant 0 : i32
    return %arg0, %c0_i32 : i32, i32
  }
  func.func @transform_1(%arg0: i32) -> (i32, i32) {
    %c0_i32 = arith.constant 0 : i32
    %c0_i32_0 = arith.constant 0 : i32
    %c0_i32_1 = arith.constant 0 : i32
    return %c0_i32, %c0_i32_0 : i32, i32
  }
  func.func @transform_2(%arg0: i32) -> (i32, i32) {
    %c0_i32 = arith.constant 0 : i32
    %c0_i32_0 = arith.constant 0 : i32
    %c0_i32_1 = arith.constant 0 : i32
    return %c0_i32, %c0_i32_0 : i32, i32
  }
  func.func @transform_3(%arg0: i32) -> (i32, i32) {
    %c0_i32 = arith.constant 0 : i32
    %c0_i32_0 = arith.constant 0 : i32
    %c0_i32_1 = arith.constant 0 : i32
    return %c0_i32, %c0_i32_0 : i32, i32
  }
  func.func @transform_4(%arg0: i32) -> (i32, i32) {
    %c0_i32 = arith.constant 0 : i32
    %c0_i32_0 = arith.constant 0 : i32
    %c0_i32_1 = arith.constant 0 : i32
    return %c0_i32, %c0_i32_0 : i32, i32
  }
  func.func @transform_5(%arg0: i32) -> (i32, i32) {
    %c0_i32 = arith.constant 0 : i32
    %c0_i32_0 = arith.constant 0 : i32
    return %arg0, %c0_i32 : i32, i32
  }
}

</mosaic_0001>

<llo_original>
// kernel: tpu_custom_call.1
$region0: #{tpu_custom_call.1}
  #allocation0 [shape = 'u32[]', space=smem, size = 0x4, offset = 0x4, fixed_abs, tag = 'smem constant byte address 0x4 - core index']
  #allocation1 [shape = 'u32[72,128]{1,0:T(1,128)}', space=vmem, size = 0x9000, scoped, tag = 'internal scratch']
  %s0 = inlined_call_operand.hbm [shape: bf16[256,128], index: 0, kind: input, shape index: {}]
  %s1 = inlined_call_operand.hbm [shape: bf16[128,256], index: 1, kind: input, shape index: {}]
  %s2 = inlined_call_operand.hbm [shape: f32[1,256], index: 2, kind: input, shape index: {}]
  %s3 = inlined_call_operand.hbm [shape: bf16[256,128], index: 3, kind: input, shape index: {}]
  %s4 = inlined_call_operand.vmem [shape: f32[1,128], index: 4, kind: input, shape index: {}]
  %s5 = inlined_call_operand.hbm [shape: f32[256,128], index: 5, kind: output, shape index: {}]
  %s6 = sld [smem:[#allocation0]]
  $region69: #{tpu_custom_call.1} parent=0
    _
  %s8 = ssub.s32 1, %s6
  %s9 = scalar_select 0, %s8, %s6
  $region1: #{tpu_custom_call.1} parent=0
    #allocation2 [shape = 'u8[65536]{0}', space=vmem, size = 0x10000, scoped, tag = 'input window, operand 0']
    #allocation3 [shape = 's32[2]{0}', space=sflag, size = 0x8, scoped, tag = 'scoped memory for tpu_custom_call.1']
    #allocation4 [shape = 's32[2]{0}', space=sflag, size = 0x8, scoped, tag = 'scoped memory for tpu_custom_call.1']
    #allocation5 [shape = 'u8[65536]{0}', space=vmem, size = 0x10000, scoped, tag = 'input window, operand 1, single buffered']
    #allocation6 [shape = 's32[1]{0}', space=sflag, size = 0x4, scoped, tag = 'scoped memory for tpu_custom_call.1']
    #allocation7 [shape = 'u8[1024]{0}', space=vmem, size = 0x400, scoped, tag = 'input window, operand 2, single buffered']
    #allocation8 [shape = 'u8[65536]{0}', space=vmem, size = 0x10000, scoped, tag = 'input window, operand 3, single buffered']
    #allocation9 [shape = 's32[1]{0}', space=sflag, size = 0x4, scoped, tag = 'scoped memory for tpu_custom_call.1']
    #allocation10 [shape = 'u8[131072]{0}', space=vmem, size = 0x20000, scoped, tag = 'output window, operand 0']
    %10 = vsyncpa [#allocation3], 0
    %s11 = scalar_lea.sflag [#allocation3], 1
    %12 = vsyncpa %s11, 0
    %13 = vsyncpa [#allocation6], 0
    %14 = vsyncpa [#allocation9], 0
    %15 = vsyncpa [#allocation4], 0
    %s16 = scalar_lea.sflag [#allocation4], 1
    %17 = vsyncpa %s16, 0
    loop: start=0, step=1, limit=4
    $region2: #{tpu_custom_call.1} parent=1 // loop_pre_header
      _
    $region3: #{tpu_custom_call.1} parent=1 // loop_header
      %s19 = sphi 0, %s23
      %p20 = scmp.ge.s32.totalorder %s19, 4
      %s29 = sphi 0, %s31
      %s32 = sphi 0, %s29
      %s33 = sphi 0, %s32
      %s49 = sphi 0, %s33
      %s53 = sphi 0, %s53
      %s55 = sphi 0, %s53
      %s56 = sphi 0, %s55
      %s70 = sphi 0, %s56
      %s74 = sphi 0, %s74
      %s76 = sphi 0, %s74
      %s77 = sphi 0, %s76
      %s91 = sphi 0, %s77
      %s95 = sphi 0, %s95
      %s97 = sphi 0, %s95
      %s98 = sphi 0, %s97
      %s112 = sphi 0, %s98
      %s116 = sphi 0, %s116
      %s118 = sphi 0, %s116
      %s119 = sphi 0, %s118
      %s133 = sphi 0, %s119
      %s139 = sphi 0, %s141
      %s142 = sphi 0, %s139
      %s143 = sphi 0, %s142
      %s159 = sphi 0, %s143
    $region4: #{tpu_custom_call.1} parent=1 // loop_header_branch
      %22 = sbr.rel (%p20) target = $region8
    $region5: #{tpu_custom_call.1} parent=1 // loop_body
      %s24 = ssub.s32 %s19, 1
      %s25 = ssub.s32 %s19, 2
      %s26 = sadd.s32 %s19, 1
      %s27 = ssub.s32 %s19, %s26
      %p28 = scmp.eq.s32.totalorder %s27, 0
      %s30 = sadd.s32 %s29, 1
      %s31 = scalar_select %p28, %s29, %s30
      %p34 = pneg %p28
      %p35 = scmp.eq.s32.totalorder %s19, 1
      %p36 = por %p34, %p35
      %p37 = scmp.ne.s32.totalorder %s29, %s32
      %p38 = scmp.eq.s32.totalorder %s19, 0
      %p39 = por %p37, %p38
      %p40 = scmp.ne.s32.totalorder %s29, %s32
      %p41 = scmp.eq.s32.totalorder %s24, 1
      %p42 = por %p40, %p41
      %p43 = scmp.ne.s32.totalorder %s32, %s33
      %p44 = scmp.eq.s32.totalorder %s24, 0
      %p45 = por %p43, %p44
      %p46 = scmp.ne.s32.totalorder %s32, %s33
      %p47 = scmp.eq.s32.totalorder %s25, 1
      %p48 = por %p46, %p47
      %p50 = scmp.ne.s32.totalorder %s33, %s49
      %p51 = scmp.eq.s32.totalorder %s25, 0
      %p52 = por %p50, %p51
      %s54 = sadd.s32 %s53, 1
      %p57 = scmp.eq.s32.totalorder %s19, 1
      %p58 = scmp.ne.s32.totalorder %s53, %s55
      %p59 = scmp.eq.s32.totalorder %s19, 0
      %p60 = por %p58, %p59
      %p61 = scmp.ne.s32.totalorder %s53, %s55
      %p62 = scmp.eq.s32.totalorder %s24, 1
      %p63 = por %p61, %p62
      %p64 = scmp.ne.s32.totalorder %s55, %s56
      %p65 = scmp.eq.s32.totalorder %s24, 0
      %p66 = por %p64, %p65
      %p67 = scmp.ne.s32.totalorder %s55, %s56
      %p68 = scmp.eq.s32.totalorder %s25, 1
      %p69 = por %p67, %p68
      %p71 = scmp.ne.s32.totalorder %s56, %s70
      %p72 = scmp.eq.s32.totalorder %s25, 0
      %p73 = por %p71, %p72
      %s75 = sadd.s32 %s74, 1
      %p78 = scmp.eq.s32.totalorder %s19, 1
      %p79 = scmp.ne.s32.totalorder %s74, %s76
      %p80 = scmp.eq.s32.totalorder %s19, 0
      %p81 = por %p79, %p80
      %p82 = scmp.ne.s32.totalorder %s74, %s76
      %p83 = scmp.eq.s32.totalorder %s24, 1
      %p84 = por %p82, %p83
      %p85 = scmp.ne.s32.totalorder %s76, %s77
      %p86 = scmp.eq.s32.totalorder %s24, 0
      %p87 = por %p85, %p86
      %p88 = scmp.ne.s32.totalorder %s76, %s77
      %p89 = scmp.eq.s32.totalorder %s25, 1
      %p90 = por %p88, %p89
      %p92 = scmp.ne.s32.totalorder %s77, %s91
      %p93 = scmp.eq.s32.totalorder %s25, 0
      %p94 = por %p92, %p93
      %s96 = sadd.s32 %s95, 1
      %p99 = scmp.eq.s32.totalorder %s19, 1
      %p100 = scmp.ne.s32.totalorder %s95, %s97
      %p101 = scmp.eq.s32.totalorder %s19, 0
      %p102 = por %p100, %p101
      %p103 = scmp.ne.s32.totalorder %s95, %s97
      %p104 = scmp.eq.s32.totalorder %s24, 1
      %p105 = por %p103, %p104
      %p106 = scmp.ne.s32.totalorder %s97, %s98
      %p107 = scmp.eq.s32.totalorder %s24, 0
      %p108 = por %p106, %p107
      %p109 = scmp.ne.s32.totalorder %s97, %s98
      %p110 = scmp.eq.s32.totalorder %s25, 1
      %p111 = por %p109, %p110
      %p113 = scmp.ne.s32.totalorder %s98, %s112
      %p114 = scmp.eq.s32.totalorder %s25, 0
      %p115 = por %p113, %p114
      %s117 = sadd.s32 %s116, 1
      %p120 = scmp.eq.s32.totalorder %s19, 1
      %p121 = scmp.ne.s32.totalorder %s116, %s118
      %p122 = scmp.eq.s32.totalorder %s19, 0
      %p123 = por %p121, %p122
      %p124 = scmp.ne.s32.totalorder %s116, %s118
      %p125 = scmp.eq.s32.totalorder %s24, 1
      %p126 = por %p124, %p125
      %p127 = scmp.ne.s32.totalorder %s118, %s119
      %p128 = scmp.eq.s32.totalorder %s24, 0
      %p129 = por %p127, %p128
      %p130 = scmp.ne.s32.totalorder %s118, %s119
      %p131 = scmp.eq.s32.totalorder %s25, 1
      %p132 = por %p130, %p131
      %p134 = scmp.ne.s32.totalorder %s119, %s133
      %p135 = scmp.eq.s32.totalorder %s25, 0
      %p136 = por %p134, %p135
      %s137 = ssub.s32 %s19, %s26
      %p138 = scmp.eq.s32.totalorder %s137, 0
      %s140 = sadd.s32 %s139, 1
      %s141 = scalar_select %p138, %s139, %s140
      %p144 = pneg %p138
      %p145 = scmp.eq.s32.totalorder %s19, 1
      %p146 = por %p144, %p145
      %p147 = scmp.ne.s32.totalorder %s139, %s142
      %p148 = scmp.eq.s32.totalorder %s19, 0
      %p149 = por %p147, %p148
      %p150 = scmp.ne.s32.totalorder %s139, %s142
      %p151 = scmp.eq.s32.totalorder %s24, 1
      %p152 = por %p150, %p151
      %p153 = scmp.ne.s32.totalorder %s142, %s143
      %p154 = scmp.eq.s32.totalorder %s24, 0
      %p155 = por %p153, %p154
      %p156 = scmp.ne.s32.totalorder %s142, %s143
      %p157 = scmp.eq.s32.totalorder %s25, 1
      %p158 = por %p156, %p157
      %p160 = scmp.ne.s32.totalorder %s143, %s159
      %p161 = scmp.eq.s32.totalorder %s25, 0
      %p162 = por %p160, %p161
      %p163 = scmp.le.s32.totalorder 1, %s19
      %p164 = scmp.lt.s32.totalorder %s19, 3
      %p165 = pnand %p163, %p164
      %p166 = pneg %p165
      // Predicated region
      $region9: #{tpu_custom_call.1} parent=5 // pred_check
        _
      $region10: #{tpu_custom_call.1} parent=5 // pred_check_branch
        %168 = sbr.rel (%p165) target = $region12
      $region11: #{tpu_custom_call.1} parent=5 // pred_region
        %s169 = ssub.s32 %s19, 1
        // Predicated region
        $region13: #{tpu_custom_call.1} parent=11 // pred_check
          %p170 = pneg %p66
        $region14: #{tpu_custom_call.1} parent=11 // pred_check_branch
          %172 = sbr.rel (%p170) target = $region16
        $region15: #{tpu_custom_call.1} parent=11 // pred_region
          %174 = vsyncadd [#allocation6], 0
          %s175 = sshll.u32 %s1, 4
          %s176 = int_to_ptr.hbm [resolvable:$true] %s175
          %s177 = sshll.u32 [#allocation5], 4
          %s178 = int_to_ptr.vmem [resolvable:$true] %s177
          %183 = dma.hbm_to_vmem [thread:$0]  %s176, 2048, %s178, [#allocation6], 128, 128, 8
        $region16: #{tpu_custom_call.1} parent=11 // pred_fallthru
          _
        // Predicated region
        $region17: #{tpu_custom_call.1} parent=11 // pred_check
          %p184 = pneg %p87
        $region18: #{tpu_custom_call.1} parent=11 // pred_check_branch
          %186 = sbr.rel (%p184) target = $region20
        $region19: #{tpu_custom_call.1} parent=11 // pred_region
          %188 = vsyncadd [#allocation6], 0
          %s190 = sshll.u32 %s2, 4
          %s191 = int_to_ptr.hbm [resolvable:$true] %s190
          %s192 = sshll.u32 [#allocation7], 4
          %s193 = int_to_ptr.vmem [resolvable:$true] %s192
          %195 = dma.hbm_to_vmem [thread:$0]  %s191, 32, %s193, [#allocation6]
        $region20: #{tpu_custom_call.1} parent=11 // pred_fallthru
          _
        // Predicated region
        $region21: #{tpu_custom_call.1} parent=11 // pred_check
          %p196 = pneg %p108
        $region22: #{tpu_custom_call.1} parent=11 // pred_check_branch
          %198 = sbr.rel (%p196) target = $region24
        $region23: #{tpu_custom_call.1} parent=11 // pred_region
          %200 = vsyncadd [#allocation9], 0
          %s201 = sshll.u32 %s3, 4
          %s202 = int_to_ptr.hbm [resolvable:$true] %s201
          %s203 = sshll.u32 [#allocation8], 4
          %s204 = int_to_ptr.vmem [resolvable:$true] %s203
          %209 = dma.hbm_to_vmem [thread:$0]  %s202, 2048, %s204, [#allocation9], 64, 64, 4
        $region24: #{tpu_custom_call.1} parent=11 // pred_fallthru
          _
        // Predicated region
        $region25: #{tpu_custom_call.1} parent=11 // pred_check
          %p210 = pneg %p129
        $region26: #{tpu_custom_call.1} parent=11 // pred_check_branch
          %212 = sbr.rel (%p210) target = $region28
        $region27: #{tpu_custom_call.1} parent=11 // pred_region
          _
        $region28: #{tpu_custom_call.1} parent=11 // pred_fallthru
          _
      $region12: #{tpu_custom_call.1} parent=5 // pred_fallthru
        _
      %p213 = scmp.lt.s32.totalorder %s19, 2
      // Predicated region
      $region29: #{tpu_custom_call.1} parent=5 // pred_check
        %p214 = pneg %p213
      $region30: #{tpu_custom_call.1} parent=5 // pred_check_branch
        %216 = sbr.rel (%p214) target = $region32
      $region31: #{tpu_custom_call.1} parent=5 // pred_region
        // Predicated region
        $region33: #{tpu_custom_call.1} parent=31 // pred_check
          %p217 = pneg %p39
        $region34: #{tpu_custom_call.1} parent=31 // pred_check_branch
          %219 = sbr.rel (%p217) target = $region36
        $region35: #{tpu_custom_call.1} parent=31 // pred_region
          %s220 = sand.u32 %s29, 1
          %s221 = scalar_lea.sflag [#allocation3], %s220
          %s222 = sand.u32 %s29, 1
          %s223 = smul.addr %s222, 64
          %s224 = scalar_lea.vmem [#allocation2], %s223
          %s225 = smul.u32 16, %s19
          %227 = vsyncadd %s221, 0
          %s228 = smul.addr %s225, 4
          %s229 = scalar_lea.hbm %s0, %s228
          %s230 = sshll.u32 %s229, 4
          %s231 = int_to_ptr.hbm [resolvable:$true] %s230
          %s232 = sshll.u32 %s224, 4
          %s233 = int_to_ptr.vmem [resolvable:$true] %s232
          %238 = dma.hbm_to_vmem [thread:$0]  %s231, 1024, %s233, %s221, 64, 64, 4
        $region36: #{tpu_custom_call.1} parent=31 // pred_fallthru
          _
      $region32: #{tpu_custom_call.1} parent=5 // pred_fallthru
        _
      %p239 = scmp.le.s32.totalorder 1, %s19
      %p240 = scmp.lt.s32.totalorder %s19, 3
      %p241 = pnand %p239, %p240
      %p242 = pneg %p241
      // Predicated region
      $region37: #{tpu_custom_call.1} parent=5 // pred_check
        _
      $region38: #{tpu_custom_call.1} parent=5 // pred_check_branch
        %244 = sbr.rel (%p241) target = $region40
      $region39: #{tpu_custom_call.1} parent=5 // pred_region
        %s245 = ssub.s32 %s19, 1
        %s246 = sand.u32 %s32, 1
        %s247 = scalar_lea.sflag [#allocation3], %s246
        %s248 = sand.u32 %s32, 1
        %s249 = smul.addr %s248, 64
        %s250 = scalar_lea.vmem [#allocation2], %s249
        // Predicated region
        $region41: #{tpu_custom_call.1} parent=39 // pred_check
          %p251 = pneg %p45
        $region42: #{tpu_custom_call.1} parent=39 // pred_check_branch
          %253 = sbr.rel (%p251) target = $region44
        $region43: #{tpu_custom_call.1} parent=39 // pred_region
          %255 = dma.done %s247, 1024
        $region44: #{tpu_custom_call.1} parent=39 // pred_fallthru
          _
        // Predicated region
        $region45: #{tpu_custom_call.1} parent=39 // pred_check
          %p256 = pneg %p66
        $region46: #{tpu_custom_call.1} parent=39 // pred_check_branch
          %258 = sbr.rel (%p256) target = $region48
        $region47: #{tpu_custom_call.1} parent=39 // pred_region
          %260 = dma.done [#allocation6], 2048
        $region48: #{tpu_custom_call.1} parent=39 // pred_fallthru
          _
        // Predicated region
        $region49: #{tpu_custom_call.1} parent=39 // pred_check
          %p261 = pneg %p87
        $region50: #{tpu_custom_call.1} parent=39 // pred_check_branch
          %263 = sbr.rel (%p261) target = $region52
        $region51: #{tpu_custom_call.1} parent=39 // pred_region
          %265 = dma.done [#allocation6], 32
        $region52: #{tpu_custom_call.1} parent=39 // pred_fallthru
          _
        // Predicated region
        $region53: #{tpu_custom_call.1} parent=39 // pred_check
          %p266 = pneg %p108
        $region54: #{tpu_custom_call.1} parent=39 // pred_check_branch
          %268 = sbr.rel (%p266) target = $region56
        $region55: #{tpu_custom_call.1} parent=39 // pred_region
          %270 = dma.done [#allocation9], 2048
        $region56: #{tpu_custom_call.1} parent=39 // pred_fallthru
          _
        %s271 = sand.u32 %s32, 1
        %s272 = scalar_lea.sflag [#allocation3], %s271
        %s273 = sand.u32 %s32, 1
        %s274 = smul.addr %s273, 64
        %s275 = scalar_lea.vmem [#allocation2], %s274
        %p276 = pneg %p45
        %p277 = pneg %p42
        %p278 = pneg %p66
        %p279 = pneg %p63
        %p280 = pneg %p87
        %p281 = pneg %p84
        %p282 = pneg %p108
        %p283 = pneg %p105
        %p284 = pneg %p129
        %p285 = pneg %p126
        %p286 = pneg %p155
        %p287 = pneg %p152
        %s288 = sand.u32 %s142, 1
        %s289 = scalar_lea.sflag [#allocation4], %s288
        %s290 = sand.u32 %s142, 1
        %s291 = smul.addr %s290, 128
        %s292 = scalar_lea.vmem [#allocation10], %s291
        %s293 = smul.u32 16, %s24
        %s294 = smul.u32 16, %s24
        %v295 = vld [vmem:[%s250] sm:$0xf]
        %v296 = vld [vmem:[%s250 + $0x4] sm:$0xf]
        %v297 = vld [vmem:[%s250 + $0x8] sm:$0xf]
        %v298 = vld [vmem:[%s250 + $0xc] sm:$0xf]
        %v299 = vld [vmem:[%s250 + $0x10] sm:$0xf]
        %v300 = vld [vmem:[%s250 + $0x14] sm:$0xf]
        %v301 = vld [vmem:[%s250 + $0x18] sm:$0xf]
        %v302 = vld [vmem:[%s250 + $0x1c] sm:$0xf]
        %v303 = vld [vmem:[%s250 + $0x20] sm:$0xf]
        %v304 = vld [vmem:[%s250 + $0x24] sm:$0xf]
        %v305 = vld [vmem:[%s250 + $0x28] sm:$0xf]
        %v306 = vld [vmem:[%s250 + $0x2c] sm:$0xf]
        %v307 = vld [vmem:[%s250 + $0x30] sm:$0xf]
        %v308 = vld [vmem:[%s250 + $0x34] sm:$0xf]
        %v309 = vld [vmem:[%s250 + $0x38] sm:$0xf]
        %v310 = vld [vmem:[%s250 + $0x3c] sm:$0xf]
        %v311 = vld [vmem:[#allocation5] sm:$0xff]
        %v312 = vld [vmem:[#allocation5 + $0x8] sm:$0xff]
        %v313 = vld [vmem:[#allocation5 + $0x10] sm:$0xff]
        %v314 = vld [vmem:[#allocation5 + $0x18] sm:$0xff]
        %v315 = vld [vmem:[#allocation5 + $0x20] sm:$0xff]
        %v316 = vld [vmem:[#allocation5 + $0x28] sm:$0xff]
        %v317 = vld [vmem:[#allocation5 + $0x30] sm:$0xff]
        %v318 = vld [vmem:[#allocation5 + $0x38] sm:$0xff]
        %v319 = vld [vmem:[#allocation5 + $0x40] sm:$0xff]
        %v320 = vld [vmem:[#allocation5 + $0x48] sm:$0xff]
        %v321 = vld [vmem:[#allocation5 + $0x50] sm:$0xff]
        %v322 = vld [vmem:[#allocation5 + $0x58] sm:$0xff]
        %v323 = vld [vmem:[#allocation5 + $0x60] sm:$0xff]
        %v324 = vld [vmem:[#allocation5 + $0x68] sm:$0xff]
        %v325 = vld [vmem:[#allocation5 + $0x70] sm:$0xff]
        %v326 = vld [vmem:[#allocation5 + $0x78] sm:$0xff]
        %v327 = vld [vmem:[#allocation7] sm:$0x3]
        %v329 = vperm.slane %v327, 0
        %v330 = vperm.slane %v327, 1
        %v349 = vunpack.c.l.b16 %v295
        %v350 = vunpack.c.l.b16 %v296
        %v351 = vunpack.c.l.b16 %v297
        %v352 = vunpack.c.l.b16 %v298
        %v353 = vunpack.c.l.b16 %v299
        %v354 = vunpack.c.l.b16 %v300
        %v355 = vunpack.c.l.b16 %v301
        %v356 = vunpack.c.l.b16 %v302
        %v357 = vunpack.c.l.b16 %v303
        %v358 = vunpack.c.l.b16 %v304
        %v359 = vunpack.c.l.b16 %v305
        %v360 = vunpack.c.l.b16 %v306
        %v361 = vunpack.c.l.b16 %v307
        %v362 = vunpack.c.l.b16 %v308
        %v363 = vunpack.c.l.b16 %v309
        %v364 = vunpack.c.l.b16 %v310
        %v365 = vpack.c.b16 %v350, %v349
        %v366 = vpack.c.b16 %v352, %v351
        %v367 = vpack.c.b16 %v354, %v353
        %v368 = vpack.c.b16 %v356, %v355
        %v369 = vpack.c.b16 %v358, %v357
        %v370 = vpack.c.b16 %v360, %v359
        %v371 = vpack.c.b16 %v362, %v361
        %v372 = vpack.c.b16 %v364, %v363
        %v397 = vunpack.c.l.b16 %v311
        %v398 = vunpack.c.h.b16 %v311
        %v399 = vunpack.c.l.b16 %v312
        %v400 = vunpack.c.h.b16 %v312
        %v401 = vunpack.c.l.b16 %v313
        %v402 = vunpack.c.h.b16 %v313
        %v403 = vunpack.c.l.b16 %v314
        %v404 = vunpack.c.h.b16 %v314
        %v405 = vunpack.c.l.b16 %v315
        %v406 = vunpack.c.h.b16 %v315
        %v407 = vunpack.c.l.b16 %v316
        %v408 = vunpack.c.h.b16 %v316
        %v409 = vunpack.c.l.b16 %v317
        %v410 = vunpack.c.h.b16 %v317
        %v411 = vunpack.c.l.b16 %v318
        %v412 = vunpack.c.h.b16 %v318
        %v413 = vunpack.c.l.b16 %v319
        %v414 = vunpack.c.h.b16 %v319
        %v415 = vunpack.c.l.b16 %v320
        %v416 = vunpack.c.h.b16 %v320
        %v417 = vunpack.c.l.b16 %v321
        %v418 = vunpack.c.h.b16 %v321
        %v419 = vunpack.c.l.b16 %v322
        %v420 = vunpack.c.h.b16 %v322
        %v421 = vunpack.c.l.b16 %v323
        %v422 = vunpack.c.h.b16 %v323
        %v423 = vunpack.c.l.b16 %v324
        %v424 = vunpack.c.h.b16 %v324
        %v425 = vunpack.c.l.b16 %v325
        %v426 = vunpack.c.h.b16 %v325
        %v427 = vunpack.c.l.b16 %v326
        %v428 = vunpack.c.h.b16 %v326
        %v429 = vpack.c.b16 %v399, %v397
        %v430 = vpack.c.b16 %v400, %v398
        %v431 = vpack.c.b16 %v403, %v401
        %v432 = vpack.c.b16 %v404, %v402
        %v433 = vpack.c.b16 %v407, %v405
        %v434 = vpack.c.b16 %v408, %v406
        %v435 = vpack.c.b16 %v411, %v409
        %v436 = vpack.c.b16 %v412, %v410
        %v437 = vpack.c.b16 %v415, %v413
        %v438 = vpack.c.b16 %v416, %v414
        %v439 = vpack.c.b16 %v419, %v417
        %v440 = vpack.c.b16 %v420, %v418
        %v441 = vpack.c.b16 %v423, %v421
        %v442 = vpack.c.b16 %v424, %v422
        %v443 = vpack.c.b16 %v427, %v425
        %v444 = vpack.c.b16 %v428, %v426
        %461 = vmatpush.bf16.msra.mxu0 %v443
        %462 = vmatpush.bf16.msra.mxu0 %v441
        %463 = vmatpush.bf16.msra.mxu0 %v439
        %464 = vmatpush.bf16.msra.mxu0 %v437
        %465 = vmatpush.bf16.msra.mxu0 %v435
        %466 = vmatpush.bf16.msra.mxu0 %v433
        %467 = vmatpush.bf16.msra.mxu0 %v431
        %468 = vmatpush.bf16.msra.mxu0 %v429
        %469 = vmatmul.bf16.gmra.mxu0 %v365
        %v470 = vpop.f32.mrf.mxu0
        %v471 = vadd.f32 %v329, %v470
        %v472 = vpop.f32.mrf.mxu0
        %v473 = vadd.f32 %v329, %v472
        %474 = vmatmul.bf16.gmra.mxu0 %v366
        %v475 = vpop.f32.mrf.mxu0
        %v476 = vadd.f32 %v329, %v475
        %v477 = vpop.f32.mrf.mxu0
        %v478 = vadd.f32 %v329, %v477
        %479 = vmatmul.bf16.gmra.mxu0 %v367
        %v480 = vpop.f32.mrf.mxu0
        %v481 = vadd.f32 %v329, %v480
        %v482 = vpop.f32.mrf.mxu0
        %v483 = vadd.f32 %v329, %v482
        %484 = vmatmul.bf16.gmra.mxu0 %v368
        %v485 = vpop.f32.mrf.mxu0
        %v486 = vadd.f32 %v329, %v485
        %v487 = vpop.f32.mrf.mxu0
        %v488 = vadd.f32 %v329, %v487
        %489 = vmatmul.bf16.gmra.mxu0 %v369
        %v490 = vpop.f32.mrf.mxu0
        %v491 = vadd.f32 %v329, %v490
        %v492 = vpop.f32.mrf.mxu0
        %v493 = vadd.f32 %v329, %v492
        %494 = vmatmul.bf16.gmra.mxu0 %v370
        %v495 = vpop.f32.mrf.mxu0
        %v496 = vadd.f32 %v329, %v495
        %v497 = vpop.f32.mrf.mxu0
        %v498 = vadd.f32 %v329, %v497
        %499 = vmatmul.bf16.gmra.mxu0 %v371
        %v500 = vpop.f32.mrf.mxu0
        %v501 = vadd.f32 %v329, %v500
        %v502 = vpop.f32.mrf.mxu0
        %v503 = vadd.f32 %v329, %v502
        %504 = vmatmul.bf16.gmra.mxu0 %v372
        %v505 = vpop.f32.mrf.mxu0
        %v506 = vadd.f32 %v329, %v505
        %v507 = vpop.f32.mrf.mxu0
        %v508 = vadd.f32 %v329, %v507
        %509 = vdwg.mxu0
        %510 = vmatpush.bf16.msra.mxu0 %v444
        %511 = vmatpush.bf16.msra.mxu0 %v442
        %512 = vmatpush.bf16.msra.mxu0 %v440
        %513 = vmatpush.bf16.msra.mxu0 %v438
        %514 = vmatpush.bf16.msra.mxu0 %v436
        %515 = vmatpush.bf16.msra.mxu0 %v434
        %516 = vmatpush.bf16.msra.mxu0 %v432
        %517 = vmatpush.bf16.msra.mxu0 %v430
        %518 = vmatmul.bf16.gmra.mxu0 %v365
        %v519 = vpop.f32.mrf.mxu0
        %v520 = vadd.f32 %v330, %v519
        %v521 = vpop.f32.mrf.mxu0
        %v522 = vadd.f32 %v330, %v521
        %523 = vmatmul.bf16.gmra.mxu0 %v366
        %v524 = vpop.f32.mrf.mxu0
        %v525 = vadd.f32 %v330, %v524
        %v526 = vpop.f32.mrf.mxu0
        %v527 = vadd.f32 %v330, %v526
        %528 = vmatmul.bf16.gmra.mxu0 %v367
        %v529 = vpop.f32.mrf.mxu0
        %v530 = vadd.f32 %v330, %v529
        %v531 = vpop.f32.mrf.mxu0
        %v532 = vadd.f32 %v330, %v531
        %533 = vmatmul.bf16.gmra.mxu0 %v368
        %v534 = vpop.f32.mrf.mxu0
        %v535 = vadd.f32 %v330, %v534
        %v536 = vpop.f32.mrf.mxu0
        %v537 = vadd.f32 %v330, %v536
        %538 = vmatmul.bf16.gmra.mxu0 %v369
        %v539 = vpop.f32.mrf.mxu0
        %v540 = vadd.f32 %v330, %v539
        %v541 = vpop.f32.mrf.mxu0
        %v542 = vadd.f32 %v330, %v541
        %543 = vmatmul.bf16.gmra.mxu0 %v370
        %v544 = vpop.f32.mrf.mxu0
        %v545 = vadd.f32 %v330, %v544
        %v546 = vpop.f32.mrf.mxu0
        %v547 = vadd.f32 %v330, %v546
        %548 = vmatmul.bf16.gmra.mxu0 %v371
        %v549 = vpop.f32.mrf.mxu0
        %v550 = vadd.f32 %v330, %v549
        %v551 = vpop.f32.mrf.mxu0
        %v552 = vadd.f32 %v330, %v551
        %553 = vmatmul.bf16.gmra.mxu0 %v372
        %v554 = vpop.f32.mrf.mxu0
        %v555 = vadd.f32 %v330, %v554
        %v556 = vpop.f32.mrf.mxu0
        %v557 = vadd.f32 %v330, %v556
        %558 = vdwg.mxu0
        %v559 = vmax.f32 %v471, 0.0
        %v560 = vmax.f32 %v520, 0.0
        %v561 = vmax.f32 %v473, 0.0
        %v562 = vmax.f32 %v522, 0.0
        %v563 = vmax.f32 %v476, 0.0
        %v564 = vmax.f32 %v525, 0.0
        %v565 = vmax.f32 %v478, 0.0
        %v566 = vmax.f32 %v527, 0.0
        %v567 = vmax.f32 %v481, 0.0
        %v568 = vmax.f32 %v530, 0.0
        %v569 = vmax.f32 %v483, 0.0
        %v570 = vmax.f32 %v532, 0.0
        %v571 = vmax.f32 %v486, 0.0
        %v572 = vmax.f32 %v535, 0.0
        %v573 = vmax.f32 %v488, 0.0
        %v574 = vmax.f32 %v537, 0.0
        %v575 = vmax.f32 %v491, 0.0
        %v576 = vmax.f32 %v540, 0.0
        %v577 = vmax.f32 %v493, 0.0
        %v578 = vmax.f32 %v542, 0.0
        %v579 = vmax.f32 %v496, 0.0
        %v580 = vmax.f32 %v545, 0.0
        %v581 = vmax.f32 %v498, 0.0
        %v582 = vmax.f32 %v547, 0.0
        %v583 = vmax.f32 %v501, 0.0
        %v584 = vmax.f32 %v550, 0.0
        %v585 = vmax.f32 %v503, 0.0
        %v586 = vmax.f32 %v552, 0.0
        %v587 = vmax.f32 %v506, 0.0
        %v588 = vmax.f32 %v555, 0.0
        %v589 = vmax.f32 %v508, 0.0
        %v590 = vmax.f32 %v557, 0.0
        %v591 = vpack.c.bf16 %v561, %v559
        %v592 = vpack.c.bf16 %v562, %v560
        %v593 = vpack.c.bf16 %v565, %v563
        %v594 = vpack.c.bf16 %v566, %v564
        %v595 = vpack.c.bf16 %v569, %v567
        %v596 = vpack.c.bf16 %v570, %v568
        %v597 = vpack.c.bf16 %v573, %v571
        %v598 = vpack.c.bf16 %v574, %v572
        %v599 = vpack.c.bf16 %v577, %v575
        %v600 = vpack.c.bf16 %v578, %v576
        %v601 = vpack.c.bf16 %v581, %v579
        %v602 = vpack.c.bf16 %v582, %v580
        %v603 = vpack.c.bf16 %v585, %v583
        %v604 = vpack.c.bf16 %v586, %v584
        %v605 = vpack.c.bf16 %v589, %v587
        %v606 = vpack.c.bf16 %v590, %v588
        %v607 = vld [vmem:[#allocation8] sm:$0xf]
        %v608 = vld [vmem:[#allocation8 + $0x4] sm:$0xf]
        %v609 = vld [vmem:[#allocation8 + $0x8] sm:$0xf]
        %v610 = vld [vmem:[#allocation8 + $0xc] sm:$0xf]
        %v611 = vld [vmem:[#allocation8 + $0x10] sm:$0xf]
        %v612 = vld [vmem:[#allocation8 + $0x14] sm:$0xf]
        %v613 = vld [vmem:[#allocation8 + $0x18] sm:$0xf]
        %v614 = vld [vmem:[#allocation8 + $0x1c] sm:$0xf]
        %v615 = vld [vmem:[#allocation8 + $0x20] sm:$0xf]
        %v616 = vld [vmem:[#allocation8 + $0x24] sm:$0xf]
        %v617 = vld [vmem:[#allocation8 + $0x28] sm:$0xf]
        %v618 = vld [vmem:[#allocation8 + $0x2c] sm:$0xf]
        %v619 = vld [vmem:[#allocation8 + $0x30] sm:$0xf]
        %v620 = vld [vmem:[#allocation8 + $0x34] sm:$0xf]
        %v621 = vld [vmem:[#allocation8 + $0x38] sm:$0xf]
        %v622 = vld [vmem:[#allocation8 + $0x3c] sm:$0xf]
        %v623 = vld [vmem:[#allocation8 + $0x40] sm:$0xf]
        %v624 = vld [vmem:[#allocation8 + $0x44] sm:$0xf]
        %v625 = vld [vmem:[#allocation8 + $0x48] sm:$0xf]
        %v626 = vld [vmem:[#allocation8 + $0x4c] sm:$0xf]
        %v627 = vld [vmem:[#allocation8 + $0x50] sm:$0xf]
        %v628 = vld [vmem:[#allocation8 + $0x54] sm:$0xf]
        %v629 = vld [vmem:[#allocation8 + $0x58] sm:$0xf]
        %v630 = vld [vmem:[#allocation8 + $0x5c] sm:$0xf]
        %v631 = vld [vmem:[#allocation8 + $0x60] sm:$0xf]
        %v632 = vld [vmem:[#allocation8 + $0x64] sm:$0xf]
        %v633 = vld [vmem:[#allocation8 + $0x68] sm:$0xf]
        %v634 = vld [vmem:[#allocation8 + $0x6c] sm:$0xf]
        %v635 = vld [vmem:[#allocation8 + $0x70] sm:$0xf]
        %v636 = vld [vmem:[#allocation8 + $0x74] sm:$0xf]
        %v637 = vld [vmem:[#allocation8 + $0x78] sm:$0xf]
        %v638 = vld [vmem:[#allocation8 + $0x7c] sm:$0xf]
        %v639 = vld [vmem:[%s4] sm:$0x1]
        %v641 = vperm.slane %v639, 0
        %v675 = vunpack.c.l.b16 %v607
        %v676 = vunpack.c.l.b16 %v608
        %v677 = vunpack.c.l.b16 %v609
        %v678 = vunpack.c.l.b16 %v610
        %v679 = vunpack.c.l.b16 %v611
        %v680 = vunpack.c.l.b16 %v612
        %v681 = vunpack.c.l.b16 %v613
        %v682 = vunpack.c.l.b16 %v614
        %v683 = vunpack.c.l.b16 %v615
        %v684 = vunpack.c.l.b16 %v616
        %v685 = vunpack.c.l.b16 %v617
        %v686 = vunpack.c.l.b16 %v618
        %v687 = vunpack.c.l.b16 %v619
        %v688 = vunpack.c.l.b16 %v620
        %v689 = vunpack.c.l.b16 %v621
        %v690 = vunpack.c.l.b16 %v622
        %v691 = vunpack.c.l.b16 %v623
        %v692 = vunpack.c.l.b16 %v624
        %v693 = vunpack.c.l.b16 %v625
        %v694 = vunpack.c.l.b16 %v626
        %v695 = vunpack.c.l.b16 %v627
        %v696 = vunpack.c.l.b16 %v628
        %v697 = vunpack.c.l.b16 %v629
        %v698 = vunpack.c.l.b16 %v630
        %v699 = vunpack.c.l.b16 %v631
        %v700 = vunpack.c.l.b16 %v632
        %v701 = vunpack.c.l.b16 %v633
        %v702 = vunpack.c.l.b16 %v634
        %v703 = vunpack.c.l.b16 %v635
        %v704 = vunpack.c.l.b16 %v636
        %v705 = vunpack.c.l.b16 %v637
        %v706 = vunpack.c.l.b16 %v638
        %v707 = vpack.c.b16 %v676, %v675
        %v708 = vpack.c.b16 %v678, %v677
        %v709 = vpack.c.b16 %v680, %v679
        %v710 = vpack.c.b16 %v682, %v681
        %v711 = vpack.c.b16 %v684, %v683
        %v712 = vpack.c.b16 %v686, %v685
        %v713 = vpack.c.b16 %v688, %v687
        %v714 = vpack.c.b16 %v690, %v689
        %v715 = vpack.c.b16 %v692, %v691
        %v716 = vpack.c.b16 %v694, %v693
        %v717 = vpack.c.b16 %v696, %v695
        %v718 = vpack.c.b16 %v698, %v697
        %v719 = vpack.c.b16 %v700, %v699
        %v720 = vpack.c.b16 %v702, %v701
        %v721 = vpack.c.b16 %v704, %v703
        %v722 = vpack.c.b16 %v706, %v705
        %739 = vmatpush.bf16.msra.mxu0 %v714
        %740 = vmatpush.bf16.msra.mxu0 %v713
        %741 = vmatpush.bf16.msra.mxu0 %v712
        %742 = vmatpush.bf16.msra.mxu0 %v711
        %743 = vmatpush.bf16.msra.mxu0 %v710
        %744 = vmatpush.bf16.msra.mxu0 %v709
        %745 = vmatpush.bf16.msra.mxu0 %v708
        %746 = vmatpush.bf16.msra.mxu0 %v707
        %747 = vmatmul.bf16.gmra.mxu0 %v591
        %v748 = vpop.f32.mrf.mxu0
        %v749 = vadd.f32 %v641, %v748
        %v750 = vpop.f32.mrf.mxu0
        %v751 = vadd.f32 %v641, %v750
        %752 = vmatmul.bf16.gmra.mxu0 %v593
        %v753 = vpop.f32.mrf.mxu0
        %v754 = vadd.f32 %v641, %v753
        %v755 = vpop.f32.mrf.mxu0
        %v756 = vadd.f32 %v641, %v755
        %757 = vmatmul.bf16.gmra.mxu0 %v595
        %v758 = vpop.f32.mrf.mxu0
        %v759 = vadd.f32 %v641, %v758
        %v760 = vpop.f32.mrf.mxu0
        %v761 = vadd.f32 %v641, %v760
        %762 = vmatmul.bf16.gmra.mxu0 %v597
        %v763 = vpop.f32.mrf.mxu0
        %v764 = vadd.f32 %v641, %v763
        %v765 = vpop.f32.mrf.mxu0
        %v766 = vadd.f32 %v641, %v765
        %767 = vmatmul.bf16.gmra.mxu0 %v599
        %v768 = vpop.f32.mrf.mxu0
        %v769 = vadd.f32 %v641, %v768
        %v770 = vpop.f32.mrf.mxu0
        %v771 = vadd.f32 %v641, %v770
        %772 = vmatmul.bf16.gmra.mxu0 %v601
        %v773 = vpop.f32.mrf.mxu0
        %v774 = vadd.f32 %v641, %v773
        %v775 = vpop.f32.mrf.mxu0
        %v776 = vadd.f32 %v641, %v775
        %777 = vmatmul.bf16.gmra.mxu0 %v603
        %v778 = vpop.f32.mrf.mxu0
        %v779 = vadd.f32 %v641, %v778
        %v780 = vpop.f32.mrf.mxu0
        %v781 = vadd.f32 %v641, %v780
        %782 = vmatmul.bf16.gmra.mxu0 %v605
        %v783 = vpop.f32.mrf.mxu0
        %v784 = vadd.f32 %v641, %v783
        %v785 = vpop.f32.mrf.mxu0
        %v786 = vadd.f32 %v641, %v785
        %787 = vdwg.mxu0
        %788 = vmatpush.bf16.msra.mxu0 %v722
        %789 = vmatpush.bf16.msra.mxu0 %v721
        %790 = vmatpush.bf16.msra.mxu0 %v720
        %791 = vmatpush.bf16.msra.mxu0 %v719
        %792 = vmatpush.bf16.msra.mxu0 %v718
        %793 = vmatpush.bf16.msra.mxu0 %v717
        %794 = vmatpush.bf16.msra.mxu0 %v716
        %795 = vmatpush.bf16.msra.mxu0 %v715
        %796 = vmatmul.bf16.gmra.mxu0 %v592
        %v797 = vpop.f32.mrf.mxu0
        %v798 = vadd.f32 %v749, %v797
        %v799 = vpop.f32.mrf.mxu0
        %v800 = vadd.f32 %v751, %v799
        %801 = vmatmul.bf16.gmra.mxu0 %v594
        %v802 = vpop.f32.mrf.mxu0
        %v803 = vadd.f32 %v754, %v802
        %v804 = vpop.f32.mrf.mxu0
        %v805 = vadd.f32 %v756, %v804
        %806 = vmatmul.bf16.gmra.mxu0 %v596
        %v807 = vpop.f32.mrf.mxu0
        %v808 = vadd.f32 %v759, %v807
        %v809 = vpop.f32.mrf.mxu0
        %v810 = vadd.f32 %v761, %v809
        %811 = vmatmul.bf16.gmra.mxu0 %v598
        %v812 = vpop.f32.mrf.mxu0
        %v813 = vadd.f32 %v764, %v812
        %v814 = vpop.f32.mrf.mxu0
        %v815 = vadd.f32 %v766, %v814
        %816 = vmatmul.bf16.gmra.mxu0 %v600
        %v817 = vpop.f32.mrf.mxu0
        %v818 = vadd.f32 %v769, %v817
        %v819 = vpop.f32.mrf.mxu0
        %v820 = vadd.f32 %v771, %v819
        %821 = vmatmul.bf16.gmra.mxu0 %v602
        %v822 = vpop.f32.mrf.mxu0
        %v823 = vadd.f32 %v774, %v822
        %v824 = vpop.f32.mrf.mxu0
        %v825 = vadd.f32 %v776, %v824
        %826 = vmatmul.bf16.gmra.mxu0 %v604
        %v827 = vpop.f32.mrf.mxu0
        %v828 = vadd.f32 %v779, %v827
        %v829 = vpop.f32.mrf.mxu0
        %v830 = vadd.f32 %v781, %v829
        %831 = vmatmul.bf16.gmra.mxu0 %v606
        %v832 = vpop.f32.mrf.mxu0
        %v833 = vadd.f32 %v784, %v832
        %v834 = vpop.f32.mrf.mxu0
        %v835 = vadd.f32 %v786, %v834
        %836 = vdwg.mxu0
        %v837 = vmax.f32 %v798, 0.0
        %v838 = vmax.f32 %v800, 0.0
        %v839 = vmax.f32 %v803, 0.0
        %v840 = vmax.f32 %v805, 0.0
        %v841 = vmax.f32 %v808, 0.0
        %v842 = vmax.f32 %v810, 0.0
        %v843 = vmax.f32 %v813, 0.0
        %v844 = vmax.f32 %v815, 0.0
        %v845 = vmax.f32 %v818, 0.0
        %v846 = vmax.f32 %v820, 0.0
        %v847 = vmax.f32 %v823, 0.0
        %v848 = vmax.f32 %v825, 0.0
        %v849 = vmax.f32 %v828, 0.0
        %v850 = vmax.f32 %v830, 0.0
        %v851 = vmax.f32 %v833, 0.0
        %v852 = vmax.f32 %v835, 0.0
        %853 = vst [vmem:[%s292] sm:$0xff] %v837
        %854 = vst [vmem:[%s292 + $0x8] sm:$0xff] %v838
        %855 = vst [vmem:[%s292 + $0x10] sm:$0xff] %v839
        %856 = vst [vmem:[%s292 + $0x18] sm:$0xff] %v840
        %857 = vst [vmem:[%s292 + $0x20] sm:$0xff] %v841
        %858 = vst [vmem:[%s292 + $0x28] sm:$0xff] %v842
        %859 = vst [vmem:[%s292 + $0x30] sm:$0xff] %v843
        %860 = vst [vmem:[%s292 + $0x38] sm:$0xff] %v844
        %861 = vst [vmem:[%s292 + $0x40] sm:$0xff] %v845
        %862 = vst [vmem:[%s292 + $0x48] sm:$0xff] %v846
        %863 = vst [vmem:[%s292 + $0x50] sm:$0xff] %v847
        %864 = vst [vmem:[%s292 + $0x58] sm:$0xff] %v848
        %865 = vst [vmem:[%s292 + $0x60] sm:$0xff] %v849
        %866 = vst [vmem:[%s292 + $0x68] sm:$0xff] %v850
        %867 = vst [vmem:[%s292 + $0x70] sm:$0xff] %v851
        %868 = vst [vmem:[%s292 + $0x78] sm:$0xff] %v852
        %s869 = sand.u32 %s142, 1
        %s870 = scalar_lea.sflag [#allocation4], %s869
        %s871 = sand.u32 %s142, 1
        %s872 = smul.addr %s871, 128
        %s873 = scalar_lea.vmem [#allocation10], %s872
        // Predicated region
        $region57: #{tpu_custom_call.1} parent=39 // pred_check
          %p874 = pneg %p152
        $region58: #{tpu_custom_call.1} parent=39 // pred_check_branch
          %876 = sbr.rel (%p874) target = $region60
        $region59: #{tpu_custom_call.1} parent=39 // pred_region
          %s877 = smul.u32 16, %s24
          %879 = vsyncadd %s870, 0
          %s880 = smul.addr %s877, 8
          %s881 = scalar_lea.hbm %s5, %s880
          %s882 = sshll.u32 %s873, 4
          %s883 = int_to_ptr.vmem [resolvable:$true] %s882
          %s884 = sshll.u32 %s881, 4
          %s885 = int_to_ptr.hbm [resolvable:$true] %s884
          %890 = dma.vmem_to_hbm [thread:$0]  %s883, 2048, %s885, %s870, 128, 128, 8
        $region60: #{tpu_custom_call.1} parent=39 // pred_fallthru
          _
      $region40: #{tpu_custom_call.1} parent=5 // pred_fallthru
        _
      %p891 = scmp.le.s32.totalorder 2, %s19
      // Predicated region
      $region61: #{tpu_custom_call.1} parent=5 // pred_check
        %p892 = pneg %p891
      $region62: #{tpu_custom_call.1} parent=5 // pred_check_branch
        %894 = sbr.rel (%p892) target = $region64
      $region63: #{tpu_custom_call.1} parent=5 // pred_region
        %s895 = ssub.s32 %s19, 2
        // Predicated region
        $region65: #{tpu_custom_call.1} parent=63 // pred_check
          %p896 = pneg %p158
        $region66: #{tpu_custom_call.1} parent=63 // pred_check_branch
          %898 = sbr.rel (%p896) target = $region68
        $region67: #{tpu_custom_call.1} parent=63 // pred_region
          %s899 = sand.u32 %s143, 1
          %s900 = scalar_lea.sflag [#allocation4], %s899
          %s901 = sand.u32 %s143, 1
          %s902 = smul.addr %s901, 128
          %s903 = scalar_lea.vmem [#allocation10], %s902
          %905 = dma.done %s900, 2048
        $region68: #{tpu_custom_call.1} parent=63 // pred_fallthru
          _
      $region64: #{tpu_custom_call.1} parent=5 // pred_fallthru
        _
    $region6: #{tpu_custom_call.1} parent=1 // loop_footer
      %s23 = sadd.s32 1, %s19
    $region7: #{tpu_custom_call.1} parent=1 // loop_footer_branch
      %18 = sbr.rel target = $region3
    $region8: #{tpu_custom_call.1} parent=1 // loop_exit
      _
    %906 = vsyncpa [#allocation3], 1
    %s907 = scalar_lea.sflag [#allocation3], 1
    %908 = vsyncpa %s907, 1
    %909 = vsyncpa [#allocation6], 1
    %910 = vsyncpa [#allocation9], 1
    %911 = vsyncpa [#allocation4], 1
    %s912 = scalar_lea.sflag [#allocation4], 1
    %913 = vsyncpa %s912, 1

// kernel: tpu_custom_call.1
$region0: #{tpu_custom_call.1}
  #allocation0 [shape = 'u32[]', space=smem, size = 0x4, offset = 0x4, fixed_abs, tag = 'smem constant byte address 0x4 - core index']
  #allocation1 [shape = 'u32[72,128]{1,0:T(1,128)}', space=vmem, size = 0x9000, scoped, tag = 'internal scratch']
  %s0 = inlined_call_operand.hbm [shape: bf16[256,128], index: 0, kind: input, shape index: {}]
  %s1 = inlined_call_operand.hbm [shape: bf16[128,256], index: 1, kind: input, shape index: {}]
  %s2 = inlined_call_operand.hbm [shape: f32[1,256], index: 2, kind: input, shape index: {}]
  %s3 = inlined_call_operand.hbm [shape: bf16[256,128], index: 3, kind: input, shape index: {}]
  %s4 = inlined_call_operand.vmem [shape: f32[1,128], index: 4, kind: input, shape index: {}]
  %s5 = inlined_call_operand.hbm [shape: f32[256,128], index: 5, kind: output, shape index: {}]
  %s6 = sld [smem:[#allocation0]]
  $region69: #{tpu_custom_call.1} parent=0
    _
  %s8 = ssub.s32 1, %s6
  %s9 = scalar_select 0, %s8, %s6
  $region1: #{tpu_custom_call.1} parent=0
    #allocation2 [shape = 'u8[65536]{0}', space=vmem, size = 0x10000, scoped, tag = 'input window, operand 0']
    #allocation3 [shape = 's32[2]{0}', space=sflag, size = 0x8, scoped, tag = 'scoped memory for tpu_custom_call.1']
    #allocation4 [shape = 's32[2]{0}', space=sflag, size = 0x8, scoped, tag = 'scoped memory for tpu_custom_call.1']
    #allocation5 [shape = 'u8[65536]{0}', space=vmem, size = 0x10000, scoped, tag = 'input window, operand 1, single buffered']
    #allocation6 [shape = 's32[1]{0}', space=sflag, size = 0x4, scoped, tag = 'scoped memory for tpu_custom_call.1']
    #allocation7 [shape = 'u8[1024]{0}', space=vmem, size = 0x400, scoped, tag = 'input window, operand 2, single buffered']
    #allocation8 [shape = 'u8[65536]{0}', space=vmem, size = 0x10000, scoped, tag = 'input window, operand 3, single buffered']
    #allocation9 [shape = 's32[1]{0}', space=sflag, size = 0x4, scoped, tag = 'scoped memory for tpu_custom_call.1']
    #allocation10 [shape = 'u8[131072]{0}', space=vmem, size = 0x20000, scoped, tag = 'output window, operand 0']
    %10 = vsyncpa [#allocation3], 0
    %s11 = scalar_lea.sflag [#allocation3], 1
    %12 = vsyncpa %s11, 0
    %13 = vsyncpa [#allocation6], 0
    %14 = vsyncpa [#allocation9], 0
    %15 = vsyncpa [#allocation4], 0
    %s16 = scalar_lea.sflag [#allocation4], 1
    %17 = vsyncpa %s16, 0
    loop: start=0, step=1, limit=4
    $region2: #{tpu_custom_call.1} parent=1 // loop_pre_header
      _
    $region3: #{tpu_custom_call.1} parent=1 // loop_header
      %s19 = sphi 0, %s23
      %p20 = scmp.ge.s32.totalorder %s19, 4
      %s29 = sphi 0, %s31
      %s32 = sphi 0, %s29
      %s33 = sphi 0, %s32
      %s49 = sphi 0, %s33
      %s53 = sphi 0, %s53
      %s55 = sphi 0, %s53
      %s56 = sphi 0, %s55
      %s70 = sphi 0, %s56
      %s74 = sphi 0, %s74
      %s76 = sphi 0, %s74
      %s77 = sphi 0, %s76
      %s91 = sphi 0, %s77
      %s95 = sphi 0, %s95
      %s97 = sphi 0, %s95
      %s98 = sphi 0, %s97
      %s112 = sphi 0, %s98
      %s116 = sphi 0, %s116
      %s118 = sphi 0, %s116
      %s119 = sphi 0, %s118
      %s133 = sphi 0, %s119
      %s139 = sphi 0, %s141
      %s142 = sphi 0, %s139
      %s143 = sphi 0, %s142
      %s159 = sphi 0, %s143
    $region4: #{tpu_custom_call.1} parent=1 // loop_header_branch
      %22 = sbr.rel (%p20) target = $region8
    $region5: #{tpu_custom_call.1} parent=1 // loop_body
      %s24 = ssub.s32 %s19, 1
      %s25 = ssub.s32 %s19, 2
      %s26 = sadd.s32 %s19, 1
      %s27 = ssub.s32 %s19, %s26
      %p28 = scmp.eq.s32.totalorder %s27, 0
      %s30 = sadd.s32 %s29, 1
      %s31 = scalar_select %p28, %s29, %s30
      %p34 = pneg %p28
      %p35 = scmp.eq.s32.totalorder %s19, 1
      %p36 = por %p34, %p35
      %p37 = scmp.ne.s32.totalorder %s29, %s32
      %p38 = scmp.eq.s32.totalorder %s19, 0
      %p39 = por %p37, %p38
      %p40 = scmp.ne.s32.totalorder %s29, %s32
      %p41 = scmp.eq.s32.totalorder %s24, 1
      %p42 = por %p40, %p41
      %p43 = scmp.ne.s32.totalorder %s32, %s33
      %p44 = scmp.eq.s32.totalorder %s24, 0
      %p45 = por %p43, %p44
      %p46 = scmp.ne.s32.totalorder %s32, %s33
      %p47 = scmp.eq.s32.totalorder %s25, 1
      %p48 = por %p46, %p47
      %p50 = scmp.ne.s32.totalorder %s33, %s49
      %p51 = scmp.eq.s32.totalorder %s25, 0
      %p52 = por %p50, %p51
      %s54 = sadd.s32 %s53, 1
      %p57 = scmp.eq.s32.totalorder %s19, 1
      %p58 = scmp.ne.s32.totalorder %s53, %s55
      %p59 = scmp.eq.s32.totalorder %s19, 0
      %p60 = por %p58, %p59
      %p61 = scmp.ne.s32.totalorder %s53, %s55
      %p62 = scmp.eq.s32.totalorder %s24, 1
      %p63 = por %p61, %p62
      %p64 = scmp.ne.s32.totalorder %s55, %s56
      %p65 = scmp.eq.s32.totalorder %s24, 0
      %p66 = por %p64, %p65
      %p67 = scmp.ne.s32.totalorder %s55, %s56
      %p68 = scmp.eq.s32.totalorder %s25, 1
      %p69 = por %p67, %p68
      %p71 = scmp.ne.s32.totalorder %s56, %s70
      %p72 = scmp.eq.s32.totalorder %s25, 0
      %p73 = por %p71, %p72
      %s75 = sadd.s32 %s74, 1
      %p78 = scmp.eq.s32.totalorder %s19, 1
      %p79 = scmp.ne.s32.totalorder %s74, %s76
      %p80 = scmp.eq.s32.totalorder %s19, 0
      %p81 = por %p79, %p80
      %p82 = scmp.ne.s32.totalorder %s74, %s76
      %p83 = scmp.eq.s32.totalorder %s24, 1
      %p84 = por %p82, %p83
      %p85 = scmp.ne.s32.totalorder %s76, %s77
      %p86 = scmp.eq.s32.totalorder %s24, 0
      %p87 = por %p85, %p86
      %p88 = scmp.ne.s32.totalorder %s76, %s77
      %p89 = scmp.eq.s32.totalorder %s25, 1
      %p90 = por %p88, %p89
      %p92 = scmp.ne.s32.totalorder %s77, %s91
      %p93 = scmp.eq.s32.totalorder %s25, 0
      %p94 = por %p92, %p93
      %s96 = sadd.s32 %s95, 1
      %p99 = scmp.eq.s32.totalorder %s19, 1
      %p100 = scmp.ne.s32.totalorder %s95, %s97
      %p101 = scmp.eq.s32.totalorder %s19, 0
      %p102 = por %p100, %p101
      %p103 = scmp.ne.s32.totalorder %s95, %s97
      %p104 = scmp.eq.s32.totalorder %s24, 1
      %p105 = por %p103, %p104
      %p106 = scmp.ne.s32.totalorder %s97, %s98
      %p107 = scmp.eq.s32.totalorder %s24, 0
      %p108 = por %p106, %p107
      %p109 = scmp.ne.s32.totalorder %s97, %s98
      %p110 = scmp.eq.s32.totalorder %s25, 1
      %p111 = por %p109, %p110
      %p113 = scmp.ne.s32.totalorder %s98, %s112
      %p114 = scmp.eq.s32.totalorder %s25, 0
      %p115 = por %p113, %p114
      %s117 = sadd.s32 %s116, 1
      %p120 = scmp.eq.s32.totalorder %s19, 1
      %p121 = scmp.ne.s32.totalorder %s116, %s118
      %p122 = scmp.eq.s32.totalorder %s19, 0
      %p123 = por %p121, %p122
      %p124 = scmp.ne.s32.totalorder %s116, %s118
      %p125 = scmp.eq.s32.totalorder %s24, 1
      %p126 = por %p124, %p125
      %p127 = scmp.ne.s32.totalorder %s118, %s119
      %p128 = scmp.eq.s32.totalorder %s24, 0
      %p129 = por %p127, %p128
      %p130 = scmp.ne.s32.totalorder %s118, %s119
      %p131 = scmp.eq.s32.totalorder %s25, 1
      %p132 = por %p130, %p131
      %p134 = scmp.ne.s32.totalorder %s119, %s133
      %p135 = scmp.eq.s32.totalorder %s25, 0
      %p136 = por %p134, %p135
      %s137 = ssub.s32 %s19, %s26
      %p138 = scmp.eq.s32.totalorder %s137, 0
      %s140 = sadd.s32 %s139, 1
      %s141 = scalar_select %p138, %s139, %s140
      %p144 = pneg %p138
      %p145 = scmp.eq.s32.totalorder %s19, 1
      %p146 = por %p144, %p145
      %p147 = scmp.ne.s32.totalorder %s139, %s142
      %p148 = scmp.eq.s32.totalorder %s19, 0
      %p149 = por %p147, %p148
      %p150 = scmp.ne.s32.totalorder %s139, %s142
      %p151 = scmp.eq.s32.totalorder %s24, 1
      %p152 = por %p150, %p151
      %p153 = scmp.ne.s32.totalorder %s142, %s143
      %p154 = scmp.eq.s32.totalorder %s24, 0
      %p155 = por %p153, %p154
      %p156 = scmp.ne.s32.totalorder %s142, %s143
      %p157 = scmp.eq.s32.totalorder %s25, 1
      %p158 = por %p156, %p157
      %p160 = scmp.ne.s32.totalorder %s143, %s159
      %p161 = scmp.eq.s32.totalorder %s25, 0
      %p162 = por %p160, %p161
      %p163 = scmp.le.s32.totalorder 1, %s19
      %p164 = scmp.lt.s32.totalorder %s19, 3
      %p165 = pnand %p163, %p164
      %p166 = pneg %p165
      // Predicated region
      $region9: #{tpu_custom_call.1} parent=5 // pred_check
        _
      $region10: #{tpu_custom_call.1} parent=5 // pred_check_branch
        %168 = sbr.rel (%p165) target = $region12
      $region11: #{tpu_custom_call.1} parent=5 // pred_region
        %s169 = ssub.s32 %s19, 1
        // Predicated region
        $region13: #{tpu_custom_call.1} parent=11 // pred_check
          %p170 = pneg %p66
        $region14: #{tpu_custom_call.1} parent=11 // pred_check_branch
          %172 = sbr.rel (%p170) target = $region16
        $region15: #{tpu_custom_call.1} parent=11 // pred_region
          %174 = vsyncadd [#allocation6], 0
          %s175 = sshll.u32 %s1, 4
          %s176 = int_to_ptr.hbm [resolvable:$true] %s175
          %s177 = sshll.u32 [#allocation5], 4
          %s178 = int_to_ptr.vmem [resolvable:$true] %s177
          %183 = dma.hbm_to_vmem [thread:$0]  %s176, 2048, %s178, [#allocation6], 128, 128, 8
        $region16: #{tpu_custom_call.1} parent=11 // pred_fallthru
          _
        // Predicated region
        $region17: #{tpu_custom_call.1} parent=11 // pred_check
          %p184 = pneg %p87
        $region18: #{tpu_custom_call.1} parent=11 // pred_check_branch
          %186 = sbr.rel (%p184) target = $region20
        $region19: #{tpu_custom_call.1} parent=11 // pred_region
          %188 = vsyncadd [#allocation6], 0
          %s190 = sshll.u32 %s2, 4
          %s191 = int_to_ptr.hbm [resolvable:$true] %s190
          %s192 = sshll.u32 [#allocation7], 4
          %s193 = int_to_ptr.vmem [resolvable:$true] %s192
          %195 = dma.hbm_to_vmem [thread:$0]  %s191, 32, %s193, [#allocation6]
        $region20: #{tpu_custom_call.1} parent=11 // pred_fallthru
          _
        // Predicated region
        $region21: #{tpu_custom_call.1} parent=11 // pred_check
          %p196 = pneg %p108
        $region22: #{tpu_custom_call.1} parent=11 // pred_check_branch
          %198 = sbr.rel (%p196) target = $region24
        $region23: #{tpu_custom_call.1} parent=11 // pred_region
          %200 = vsyncadd [#allocation9], 0
          %s201 = sshll.u32 %s3, 4
          %s202 = int_to_ptr.hbm [resolvable:$true] %s201
          %s203 = sshll.u32 [#allocation8], 4
          %s204 = int_to_ptr.vmem [resolvable:$true] %s203
          %209 = dma.hbm_to_vmem [thread:$0]  %s202, 2048, %s204, [#allocation9], 64, 64, 4
        $region24: #{tpu_custom_call.1} parent=11 // pred_fallthru
          _
        // Predicated region
        $region25: #{tpu_custom_call.1} parent=11 // pred_check
          %p210 = pneg %p129
        $region26: #{tpu_custom_call.1} parent=11 // pred_check_branch
          %212 = sbr.rel (%p210) target = $region28
        $region27: #{tpu_custom_call.1} parent=11 // pred_region
          _
        $region28: #{tpu_custom_call.1} parent=11 // pred_fallthru
          _
      $region12: #{tpu_custom_call.1} parent=5 // pred_fallthru
        _
      %p213 = scmp.lt.s32.totalorder %s19, 2
      // Predicated region
      $region29: #{tpu_custom_call.1} parent=5 // pred_check
        %p214 = pneg %p213
      $region30: #{tpu_custom_call.1} parent=5 // pred_check_branch
        %216 = sbr.rel (%p214) target = $region32
      $region31: #{tpu_custom_call.1} parent=5 // pred_region
        // Predicated region
        $region33: #{tpu_custom_call.1} parent=31 // pred_check
          %p217 = pneg %p39
        $region34: #{tpu_custom_call.1} parent=31 // pred_check_branch
          %219 = sbr.rel (%p217) target = $region36
        $region35: #{tpu_custom_call.1} parent=31 // pred_region
          %s220 = sand.u32 %s29, 1
          %s221 = scalar_lea.sflag [#allocation3], %s220
          %s222 = sand.u32 %s29, 1
          %s223 = smul.addr %s222, 64
          %s224 = scalar_lea.vmem [#allocation2], %s223
          %s225 = smul.u32 16, %s19
          %227 = vsyncadd %s221, 0
          %s228 = smul.addr %s225, 4
          %s229 = scalar_lea.hbm %s0, %s228
          %s230 = sshll.u32 %s229, 4
          %s231 = int_to_ptr.hbm [resolvable:$true] %s230
          %s232 = sshll.u32 %s224, 4
          %s233 = int_to_ptr.vmem [resolvable:$true] %s232
          %238 = dma.hbm_to_vmem [thread:$0]  %s231, 1024, %s233, %s221, 64, 64, 4
        $region36: #{tpu_custom_call.1} parent=31 // pred_fallthru
          _
      $region32: #{tpu_custom_call.1} parent=5 // pred_fallthru
        _
      %p239 = scmp.le.s32.totalorder 1, %s19
      %p240 = scmp.lt.s32.totalorder %s19, 3
      %p241 = pnand %p239, %p240
      %p242 = pneg %p241
      // Predicated region
      $region37: #{tpu_custom_call.1} parent=5 // pred_check
        _
      $region38: #{tpu_custom_call.1} parent=5 // pred_check_branch
        %244 = sbr.rel (%p241) target = $region40
      $region39: #{tpu_custom_call.1} parent=5 // pred_region
        %s245 = ssub.s32 %s19, 1
        %s246 = sand.u32 %s32, 1
        %s247 = scalar_lea.sflag [#allocation3], %s246
        %s248 = sand.u32 %s32, 1
        %s249 = smul.addr %s248, 64
        %s250 = scalar_lea.vmem [#allocation2], %s249
        // Predicated region
        $region41: #{tpu_custom_call.1} parent=39 // pred_check
          %p251 = pneg %p45
        $region42: #{tpu_custom_call.1} parent=39 // pred_check_branch
          %253 = sbr.rel (%p251) target = $region44
        $region43: #{tpu_custom_call.1} parent=39 // pred_region
          %255 = dma.done %s247, 1024
        $region44: #{tpu_custom_call.1} parent=39 // pred_fallthru
          _
        // Predicated region
        $region45: #{tpu_custom_call.1} parent=39 // pred_check
          %p256 = pneg %p66
        $region46: #{tpu_custom_call.1} parent=39 // pred_check_branch
          %258 = sbr.rel (%p256) target = $region48
        $region47: #{tpu_custom_call.1} parent=39 // pred_region
          %260 = dma.done [#allocation6], 2048
        $region48: #{tpu_custom_call.1} parent=39 // pred_fallthru
          _
        // Predicated region
        $region49: #{tpu_custom_call.1} parent=39 // pred_check
          %p261 = pneg %p87
        $region50: #{tpu_custom_call.1} parent=39 // pred_check_branch
          %263 = sbr.rel (%p261) target = $region52
        $region51: #{tpu_custom_call.1} parent=39 // pred_region
          %265 = dma.done [#allocation6], 32
        $region52: #{tpu_custom_call.1} parent=39 // pred_fallthru
          _
        // Predicated region
        $region53: #{tpu_custom_call.1} parent=39 // pred_check
          %p266 = pneg %p108
        $region54: #{tpu_custom_call.1} parent=39 // pred_check_branch
          %268 = sbr.rel (%p266) target = $region56
        $region55: #{tpu_custom_call.1} parent=39 // pred_region
          %270 = dma.done [#allocation9], 2048
        $region56: #{tpu_custom_call.1} parent=39 // pred_fallthru
          _
        %s271 = sand.u32 %s32, 1
        %s272 = scalar_lea.sflag [#allocation3], %s271
        %s273 = sand.u32 %s32, 1
        %s274 = smul.addr %s273, 64
        %s275 = scalar_lea.vmem [#allocation2], %s274
        %p276 = pneg %p45
        %p277 = pneg %p42
        %p278 = pneg %p66
        %p279 = pneg %p63
        %p280 = pneg %p87
        %p281 = pneg %p84
        %p282 = pneg %p108
        %p283 = pneg %p105
        %p284 = pneg %p129
        %p285 = pneg %p126
        %p286 = pneg %p155
        %p287 = pneg %p152
        %s288 = sand.u32 %s142, 1
        %s289 = scalar_lea.sflag [#allocation4], %s288
        %s290 = sand.u32 %s142, 1
        %s291 = smul.addr %s290, 128
        %s292 = scalar_lea.vmem [#allocation10], %s291
        %s293 = smul.u32 16, %s24
        %s294 = smul.u32 16, %s24
        %v295 = vld [vmem:[%s250] sm:$0xf]
        %v296 = vld [vmem:[%s250 + $0x4] sm:$0xf]
        %v297 = vld [vmem:[%s250 + $0x8] sm:$0xf]
        %v298 = vld [vmem:[%s250 + $0xc] sm:$0xf]
        %v299 = vld [vmem:[%s250 + $0x10] sm:$0xf]
        %v300 = vld [vmem:[%s250 + $0x14] sm:$0xf]
        %v301 = vld [vmem:[%s250 + $0x18] sm:$0xf]
        %v302 = vld [vmem:[%s250 + $0x1c] sm:$0xf]
        %v303 = vld [vmem:[%s250 + $0x20] sm:$0xf]
        %v304 = vld [vmem:[%s250 + $0x24] sm:$0xf]
        %v305 = vld [vmem:[%s250 + $0x28] sm:$0xf]
        %v306 = vld [vmem:[%s250 + $0x2c] sm:$0xf]
        %v307 = vld [vmem:[%s250 + $0x30] sm:$0xf]
        %v308 = vld [vmem:[%s250 + $0x34] sm:$0xf]
        %v309 = vld [vmem:[%s250 + $0x38] sm:$0xf]
        %v310 = vld [vmem:[%s250 + $0x3c] sm:$0xf]
        %v311 = vld [vmem:[#allocation5] sm:$0xff]
        %v312 = vld [vmem:[#allocation5 + $0x8] sm:$0xff]
        %v313 = vld [vmem:[#allocation5 + $0x10] sm:$0xff]
        %v314 = vld [vmem:[#allocation5 + $0x18] sm:$0xff]
        %v315 = vld [vmem:[#allocation5 + $0x20] sm:$0xff]
        %v316 = vld [vmem:[#allocation5 + $0x28] sm:$0xff]
        %v317 = vld [vmem:[#allocation5 + $0x30] sm:$0xff]
        %v318 = vld [vmem:[#allocation5 + $0x38] sm:$0xff]
        %v319 = vld [vmem:[#allocation5 + $0x40] sm:$0xff]
        %v320 = vld [vmem:[#allocation5 + $0x48] sm:$0xff]
        %v321 = vld [vmem:[#allocation5 + $0x50] sm:$0xff]
        %v322 = vld [vmem:[#allocation5 + $0x58] sm:$0xff]
        %v323 = vld [vmem:[#allocation5 + $0x60] sm:$0xff]
        %v324 = vld [vmem:[#allocation5 + $0x68] sm:$0xff]
        %v325 = vld [vmem:[#allocation5 + $0x70] sm:$0xff]
        %v326 = vld [vmem:[#allocation5 + $0x78] sm:$0xff]
        %v327 = vld [vmem:[#allocation7] sm:$0x3]
        %v329 = vperm.slane %v327, 0
        %v330 = vperm.slane %v327, 1
        %v349 = vunpack.c.l.b16 %v295
        %v350 = vunpack.c.l.b16 %v296
        %v351 = vunpack.c.l.b16 %v297
        %v352 = vunpack.c.l.b16 %v298
        %v353 = vunpack.c.l.b16 %v299
        %v354 = vunpack.c.l.b16 %v300
        %v355 = vunpack.c.l.b16 %v301
        %v356 = vunpack.c.l.b16 %v302
        %v357 = vunpack.c.l.b16 %v303
        %v358 = vunpack.c.l.b16 %v304
        %v359 = vunpack.c.l.b16 %v305
        %v360 = vunpack.c.l.b16 %v306
        %v361 = vunpack.c.l.b16 %v307
        %v362 = vunpack.c.l.b16 %v308
        %v363 = vunpack.c.l.b16 %v309
        %v364 = vunpack.c.l.b16 %v310
        %v365 = vpack.c.b16 %v350, %v349
        %v366 = vpack.c.b16 %v352, %v351
        %v367 = vpack.c.b16 %v354, %v353
        %v368 = vpack.c.b16 %v356, %v355
        %v369 = vpack.c.b16 %v358, %v357
        %v370 = vpack.c.b16 %v360, %v359
        %v371 = vpack.c.b16 %v362, %v361
        %v372 = vpack.c.b16 %v364, %v363
        %v397 = vunpack.c.l.b16 %v311
        %v398 = vunpack.c.h.b16 %v311
        %v399 = vunpack.c.l.b16 %v312
        %v400 = vunpack.c.h.b16 %v312
        %v401 = vunpack.c.l.b16 %v313
        %v402 = vunpack.c.h.b16 %v313
        %v403 = vunpack.c.l.b16 %v314
        %v404 = vunpack.c.h.b16 %v314
        %v405 = vunpack.c.l.b16 %v315
        %v406 = vunpack.c.h.b16 %v315
        %v407 = vunpack.c.l.b16 %v316
        %v408 = vunpack.c.h.b16 %v316
        %v409 = vunpack.c.l.b16 %v317
        %v410 = vunpack.c.h.b16 %v317
        %v411 = vunpack.c.l.b16 %v318
        %v412 = vunpack.c.h.b16 %v318
        %v413 = vunpack.c.l.b16 %v319
        %v414 = vunpack.c.h.b16 %v319
        %v415 = vunpack.c.l.b16 %v320
        %v416 = vunpack.c.h.b16 %v320
        %v417 = vunpack.c.l.b16 %v321
        %v418 = vunpack.c.h.b16 %v321
        %v419 = vunpack.c.l.b16 %v322
        %v420 = vunpack.c.h.b16 %v322
        %v421 = vunpack.c.l.b16 %v323
        %v422 = vunpack.c.h.b16 %v323
        %v423 = vunpack.c.l.b16 %v324
        %v424 = vunpack.c.h.b16 %v324
        %v425 = vunpack.c.l.b16 %v325
        %v426 = vunpack.c.h.b16 %v325
        %v427 = vunpack.c.l.b16 %v326
        %v428 = vunpack.c.h.b16 %v326
        %v429 = vpack.c.b16 %v399, %v397
        %v430 = vpack.c.b16 %v400, %v398
        %v431 = vpack.c.b16 %v403, %v401
        %v432 = vpack.c.b16 %v404, %v402
        %v433 = vpack.c.b16 %v407, %v405
        %v434 = vpack.c.b16 %v408, %v406
        %v435 = vpack.c.b16 %v411, %v409
        %v436 = vpack.c.b16 %v412, %v410
        %v437 = vpack.c.b16 %v415, %v413
        %v438 = vpack.c.b16 %v416, %v414
        %v439 = vpack.c.b16 %v419, %v417
        %v440 = vpack.c.b16 %v420, %v418
        %v441 = vpack.c.b16 %v423, %v421
        %v442 = vpack.c.b16 %v424, %v422
        %v443 = vpack.c.b16 %v427, %v425
        %v444 = vpack.c.b16 %v428, %v426
        %461 = vmatpush.bf16.msra.mxu0 %v443
        %462 = vmatpush.bf16.msra.mxu0 %v441
        %463 = vmatpush.bf16.msra.mxu0 %v439
        %464 = vmatpush.bf16.msra.mxu0 %v437
        %465 = vmatpush.bf16.msra.mxu0 %v435
        %466 = vmatpush.bf16.msra.mxu0 %v433
        %467 = vmatpush.bf16.msra.mxu0 %v431
        %468 = vmatpush.bf16.msra.mxu0 %v429
        %469 = vmatmul.bf16.gmra.mxu0 %v365
        %v470 = vpop.f32.mrf.mxu0
        %v471 = vadd.f32 %v329, %v470
        %v472 = vpop.f32.mrf.mxu0
        %v473 = vadd.f32 %v329, %v472
        %474 = vmatmul.bf16.gmra.mxu0 %v366
        %v475 = vpop.f32.mrf.mxu0
        %v476 = vadd.f32 %v329, %v475
        %v477 = vpop.f32.mrf.mxu0
        %v478 = vadd.f32 %v329, %v477
        %479 = vmatmul.bf16.gmra.mxu0 %v367
        %v480 = vpop.f32.mrf.mxu0
        %v481 = vadd.f32 %v329, %v480
        %v482 = vpop.f32.mrf.mxu0
        %v483 = vadd.f32 %v329, %v482
        %484 = vmatmul.bf16.gmra.mxu0 %v368
        %v485 = vpop.f32.mrf.mxu0
        %v486 = vadd.f32 %v329, %v485
        %v487 = vpop.f32.mrf.mxu0
        %v488 = vadd.f32 %v329, %v487
        %489 = vmatmul.bf16.gmra.mxu0 %v369
        %v490 = vpop.f32.mrf.mxu0
        %v491 = vadd.f32 %v329, %v490
        %v492 = vpop.f32.mrf.mxu0
        %v493 = vadd.f32 %v329, %v492
        %494 = vmatmul.bf16.gmra.mxu0 %v370
        %v495 = vpop.f32.mrf.mxu0
        %v496 = vadd.f32 %v329, %v495
        %v497 = vpop.f32.mrf.mxu0
        %v498 = vadd.f32 %v329, %v497
        %499 = vmatmul.bf16.gmra.mxu0 %v371
        %v500 = vpop.f32.mrf.mxu0
        %v501 = vadd.f32 %v329, %v500
        %v502 = vpop.f32.mrf.mxu0
        %v503 = vadd.f32 %v329, %v502
        %504 = vmatmul.bf16.gmra.mxu0 %v372
        %v505 = vpop.f32.mrf.mxu0
        %v506 = vadd.f32 %v329, %v505
        %v507 = vpop.f32.mrf.mxu0
        %v508 = vadd.f32 %v329, %v507
        %509 = vdwg.mxu0
        %510 = vmatpush.bf16.msra.mxu0 %v444
        %511 = vmatpush.bf16.msra.mxu0 %v442
        %512 = vmatpush.bf16.msra.mxu0 %v440
        %513 = vmatpush.bf16.msra.mxu0 %v438
        %514 = vmatpush.bf16.msra.mxu0 %v436
        %515 = vmatpush.bf16.msra.mxu0 %v434
        %516 = vmatpush.bf16.msra.mxu0 %v432
        %517 = vmatpush.bf16.msra.mxu0 %v430
        %518 = vmatmul.bf16.gmra.mxu0 %v365
        %v519 = vpop.f32.mrf.mxu0
        %v520 = vadd.f32 %v330, %v519
        %v521 = vpop.f32.mrf.mxu0
        %v522 = vadd.f32 %v330, %v521
        %523 = vmatmul.bf16.gmra.mxu0 %v366
        %v524 = vpop.f32.mrf.mxu0
        %v525 = vadd.f32 %v330, %v524
        %v526 = vpop.f32.mrf.mxu0
        %v527 = vadd.f32 %v330, %v526
        %528 = vmatmul.bf16.gmra.mxu0 %v367
        %v529 = vpop.f32.mrf.mxu0
        %v530 = vadd.f32 %v330, %v529
        %v531 = vpop.f32.mrf.mxu0
        %v532 = vadd.f32 %v330, %v531
        %533 = vmatmul.bf16.gmra.mxu0 %v368
        %v534 = vpop.f32.mrf.mxu0
        %v535 = vadd.f32 %v330, %v534
        %v536 = vpop.f32.mrf.mxu0
        %v537 = vadd.f32 %v330, %v536
        %538 = vmatmul.bf16.gmra.mxu0 %v369
        %v539 = vpop.f32.mrf.mxu0
        %v540 = vadd.f32 %v330, %v539
        %v541 = vpop.f32.mrf.mxu0
        %v542 = vadd.f32 %v330, %v541
        %543 = vmatmul.bf16.gmra.mxu0 %v370
        %v544 = vpop.f32.mrf.mxu0
        %v545 = vadd.f32 %v330, %v544
        %v546 = vpop.f32.mrf.mxu0
        %v547 = vadd.f32 %v330, %v546
        %548 = vmatmul.bf16.gmra.mxu0 %v371
        %v549 = vpop.f32.mrf.mxu0
        %v550 = vadd.f32 %v330, %v549
        %v551 = vpop.f32.mrf.mxu0
        %v552 = vadd.f32 %v330, %v551
        %553 = vmatmul.bf16.gmra.mxu0 %v372
        %v554 = vpop.f32.mrf.mxu0
        %v555 = vadd.f32 %v330, %v554
        %v556 = vpop.f32.mrf.mxu0
        %v557 = vadd.f32 %v330, %v556
        %558 = vdwg.mxu0
        %v559 = vmax.f32 %v471, 0.0
        %v560 = vmax.f32 %v520, 0.0
        %v561 = vmax.f32 %v473, 0.0
        %v562 = vmax.f32 %v522, 0.0
        %v563 = vmax.f32 %v476, 0.0
        %v564 = vmax.f32 %v525, 0.0
        %v565 = vmax.f32 %v478, 0.0
        %v566 = vmax.f32 %v527, 0.0
        %v567 = vmax.f32 %v481, 0.0
        %v568 = vmax.f32 %v530, 0.0
        %v569 = vmax.f32 %v483, 0.0
        %v570 = vmax.f32 %v532, 0.0
        %v571 = vmax.f32 %v486, 0.0
        %v572 = vmax.f32 %v535, 0.0
        %v573 = vmax.f32 %v488, 0.0
        %v574 = vmax.f32 %v537, 0.0
        %v575 = vmax.f32 %v491, 0.0
        %v576 = vmax.f32 %v540, 0.0
        %v577 = vmax.f32 %v493, 0.0
        %v578 = vmax.f32 %v542, 0.0
        %v579 = vmax.f32 %v496, 0.0
        %v580 = vmax.f32 %v545, 0.0
        %v581 = vmax.f32 %v498, 0.0
        %v582 = vmax.f32 %v547, 0.0
        %v583 = vmax.f32 %v501, 0.0
        %v584 = vmax.f32 %v550, 0.0
        %v585 = vmax.f32 %v503, 0.0
        %v586 = vmax.f32 %v552, 0.0
        %v587 = vmax.f32 %v506, 0.0
        %v588 = vmax.f32 %v555, 0.0
        %v589 = vmax.f32 %v508, 0.0
        %v590 = vmax.f32 %v557, 0.0
        %v591 = vpack.c.bf16 %v561, %v559
        %v592 = vpack.c.bf16 %v562, %v560
        %v593 = vpack.c.bf16 %v565, %v563
        %v594 = vpack.c.bf16 %v566, %v564
        %v595 = vpack.c.bf16 %v569, %v567
        %v596 = vpack.c.bf16 %v570, %v568
        %v597 = vpack.c.bf16 %v573, %v571
        %v598 = vpack.c.bf16 %v574, %v572
        %v599 = vpack.c.bf16 %v577, %v575
        %v600 = vpack.c.bf16 %v578, %v576
        %v601 = vpack.c.bf16 %v581, %v579
        %v602 = vpack.c.bf16 %v582, %v580
        %v603 = vpack.c.bf16 %v585, %v583
        %v604 = vpack.c.bf16 %v586, %v584
        %v605 = vpack.c.bf16 %v589, %v587
        %v606 = vpack.c.bf16 %v590, %v588
        %v607 = vld [vmem:[#allocation8] sm:$0xf]
        %v608 = vld [vmem:[#allocation8 + $0x4] sm:$0xf]
        %v609 = vld [vmem:[#allocation8 + $0x8] sm:$0xf]
        %v610 = vld [vmem:[#allocation8 + $0xc] sm:$0xf]
        %v611 = vld [vmem:[#allocation8 + $0x10] sm:$0xf]
        %v612 = vld [vmem:[#allocation8 + $0x14] sm:$0xf]
        %v613 = vld [vmem:[#allocation8 + $0x18] sm:$0xf]
        %v614 = vld [vmem:[#allocation8 + $0x1c] sm:$0xf]
        %v615 = vld [vmem:[#allocation8 + $0x20] sm:$0xf]
        %v616 = vld [vmem:[#allocation8 + $0x24] sm:$0xf]
        %v617 = vld [vmem:[#allocation8 + $0x28] sm:$0xf]
        %v618 = vld [vmem:[#allocation8 + $0x2c] sm:$0xf]
        %v619 = vld [vmem:[#allocation8 + $0x30] sm:$0xf]
        %v620 = vld [vmem:[#allocation8 + $0x34] sm:$0xf]
        %v621 = vld [vmem:[#allocation8 + $0x38] sm:$0xf]
        %v622 = vld [vmem:[#allocation8 + $0x3c] sm:$0xf]
        %v623 = vld [vmem:[#allocation8 + $0x40] sm:$0xf]
        %v624 = vld [vmem:[#allocation8 + $0x44] sm:$0xf]
        %v625 = vld [vmem:[#allocation8 + $0x48] sm:$0xf]
        %v626 = vld [vmem:[#allocation8 + $0x4c] sm:$0xf]
        %v627 = vld [vmem:[#allocation8 + $0x50] sm:$0xf]
        %v628 = vld [vmem:[#allocation8 + $0x54] sm:$0xf]
        %v629 = vld [vmem:[#allocation8 + $0x58] sm:$0xf]
        %v630 = vld [vmem:[#allocation8 + $0x5c] sm:$0xf]
        %v631 = vld [vmem:[#allocation8 + $0x60] sm:$0xf]
        %v632 = vld [vmem:[#allocation8 + $0x64] sm:$0xf]
        %v633 = vld [vmem:[#allocation8 + $0x68] sm:$0xf]
        %v634 = vld [vmem:[#allocation8 + $0x6c] sm:$0xf]
        %v635 = vld [vmem:[#allocation8 + $0x70] sm:$0xf]
        %v636 = vld [vmem:[#allocation8 + $0x74] sm:$0xf]
        %v637 = vld [vmem:[#allocation8 + $0x78] sm:$0xf]
        %v638 = vld [vmem:[#allocation8 + $0x7c] sm:$0xf]
        %v639 = vld [vmem:[%s4] sm:$0x1]
        %v641 = vperm.slane %v639, 0
        %v675 = vunpack.c.l.b16 %v607
        %v676 = vunpack.c.l.b16 %v608
        %v677 = vunpack.c.l.b16 %v609
        %v678 = vunpack.c.l.b16 %v610
        %v679 = vunpack.c.l.b16 %v611
        %v680 = vunpack.c.l.b16 %v612
        %v681 = vunpack.c.l.b16 %v613
        %v682 = vunpack.c.l.b16 %v614
        %v683 = vunpack.c.l.b16 %v615
        %v684 = vunpack.c.l.b16 %v616
        %v685 = vunpack.c.l.b16 %v617
        %v686 = vunpack.c.l.b16 %v618
        %v687 = vunpack.c.l.b16 %v619
        %v688 = vunpack.c.l.b16 %v620
        %v689 = vunpack.c.l.b16 %v621
        %v690 = vunpack.c.l.b16 %v622
        %v691 = vunpack.c.l.b16 %v623
        %v692 = vunpack.c.l.b16 %v624
        %v693 = vunpack.c.l.b16 %v625
        %v694 = vunpack.c.l.b16 %v626
        %v695 = vunpack.c.l.b16 %v627
        %v696 = vunpack.c.l.b16 %v628
        %v697 = vunpack.c.l.b16 %v629
        %v698 = vunpack.c.l.b16 %v630
        %v699 = vunpack.c.l.b16 %v631
        %v700 = vunpack.c.l.b16 %v632
        %v701 = vunpack.c.l.b16 %v633
        %v702 = vunpack.c.l.b16 %v634
        %v703 = vunpack.c.l.b16 %v635
        %v704 = vunpack.c.l.b16 %v636
        %v705 = vunpack.c.l.b16 %v637
        %v706 = vunpack.c.l.b16 %v638
        %v707 = vpack.c.b16 %v676, %v675
        %v708 = vpack.c.b16 %v678, %v677
        %v709 = vpack.c.b16 %v680, %v679
        %v710 = vpack.c.b16 %v682, %v681
        %v711 = vpack.c.b16 %v684, %v683
        %v712 = vpack.c.b16 %v686, %v685
        %v713 = vpack.c.b16 %v688, %v687
        %v714 = vpack.c.b16 %v690, %v689
        %v715 = vpack.c.b16 %v692, %v691
        %v716 = vpack.c.b16 %v694, %v693
        %v717 = vpack.c.b16 %v696, %v695
        %v718 = vpack.c.b16 %v698, %v697
        %v719 = vpack.c.b16 %v700, %v699
        %v720 = vpack.c.b16 %v702, %v701
        %v721 = vpack.c.b16 %v704, %v703
        %v722 = vpack.c.b16 %v706, %v705
        %739 = vmatpush.bf16.msra.mxu0 %v714
        %740 = vmatpush.bf16.msra.mxu0 %v713
        %741 = vmatpush.bf16.msra.mxu0 %v712
        %742 = vmatpush.bf16.msra.mxu0 %v711
        %743 = vmatpush.bf16.msra.mxu0 %v710
        %744 = vmatpush.bf16.msra.mxu0 %v709
        %745 = vmatpush.bf16.msra.mxu0 %v708
        %746 = vmatpush.bf16.msra.mxu0 %v707
        %747 = vmatmul.bf16.gmra.mxu0 %v591
        %v748 = vpop.f32.mrf.mxu0
        %v749 = vadd.f32 %v641, %v748
        %v750 = vpop.f32.mrf.mxu0
        %v751 = vadd.f32 %v641, %v750
        %752 = vmatmul.bf16.gmra.mxu0 %v593
        %v753 = vpop.f32.mrf.mxu0
        %v754 = vadd.f32 %v641, %v753
        %v755 = vpop.f32.mrf.mxu0
        %v756 = vadd.f32 %v641, %v755
        %757 = vmatmul.bf16.gmra.mxu0 %v595
        %v758 = vpop.f32.mrf.mxu0
        %v759 = vadd.f32 %v641, %v758
        %v760 = vpop.f32.mrf.mxu0
        %v761 = vadd.f32 %v641, %v760
        %762 = vmatmul.bf16.gmra.mxu0 %v597
        %v763 = vpop.f32.mrf.mxu0
        %v764 = vadd.f32 %v641, %v763
        %v765 = vpop.f32.mrf.mxu0
        %v766 = vadd.f32 %v641, %v765
        %767 = vmatmul.bf16.gmra.mxu0 %v599
        %v768 = vpop.f32.mrf.mxu0
        %v769 = vadd.f32 %v641, %v768
        %v770 = vpop.f32.mrf.mxu0
        %v771 = vadd.f32 %v641, %v770
        %772 = vmatmul.bf16.gmra.mxu0 %v601
        %v773 = vpop.f32.mrf.mxu0
        %v774 = vadd.f32 %v641, %v773
        %v775 = vpop.f32.mrf.mxu0
        %v776 = vadd.f32 %v641, %v775
        %777 = vmatmul.bf16.gmra.mxu0 %v603
        %v778 = vpop.f32.mrf.mxu0
        %v779 = vadd.f32 %v641, %v778
        %v780 = vpop.f32.mrf.mxu0
        %v781 = vadd.f32 %v641, %v780
        %782 = vmatmul.bf16.gmra.mxu0 %v605
        %v783 = vpop.f32.mrf.mxu0
        %v784 = vadd.f32 %v641, %v783
        %v785 = vpop.f32.mrf.mxu0
        %v786 = vadd.f32 %v641, %v785
        %787 = vdwg.mxu0
        %788 = vmatpush.bf16.msra.mxu0 %v722
        %789 = vmatpush.bf16.msra.mxu0 %v721
        %790 = vmatpush.bf16.msra.mxu0 %v720
        %791 = vmatpush.bf16.msra.mxu0 %v719
        %792 = vmatpush.bf16.msra.mxu0 %v718
        %793 = vmatpush.bf16.msra.mxu0 %v717
        %794 = vmatpush.bf16.msra.mxu0 %v716
        %795 = vmatpush.bf16.msra.mxu0 %v715
        %796 = vmatmul.bf16.gmra.mxu0 %v592
        %v797 = vpop.f32.mrf.mxu0
        %v798 = vadd.f32 %v749, %v797
        %v799 = vpop.f32.mrf.mxu0
        %v800 = vadd.f32 %v751, %v799
        %801 = vmatmul.bf16.gmra.mxu0 %v594
        %v802 = vpop.f32.mrf.mxu0
        %v803 = vadd.f32 %v754, %v802
        %v804 = vpop.f32.mrf.mxu0
        %v805 = vadd.f32 %v756, %v804
        %806 = vmatmul.bf16.gmra.mxu0 %v596
        %v807 = vpop.f32.mrf.mxu0
        %v808 = vadd.f32 %v759, %v807
        %v809 = vpop.f32.mrf.mxu0
        %v810 = vadd.f32 %v761, %v809
        %811 = vmatmul.bf16.gmra.mxu0 %v598
        %v812 = vpop.f32.mrf.mxu0
        %v813 = vadd.f32 %v764, %v812
        %v814 = vpop.f32.mrf.mxu0
        %v815 = vadd.f32 %v766, %v814
        %816 = vmatmul.bf16.gmra.mxu0 %v600
        %v817 = vpop.f32.mrf.mxu0
        %v818 = vadd.f32 %v769, %v817
        %v819 = vpop.f32.mrf.mxu0
        %v820 = vadd.f32 %v771, %v819
        %821 = vmatmul.bf16.gmra.mxu0 %v602
        %v822 = vpop.f32.mrf.mxu0
        %v823 = vadd.f32 %v774, %v822
        %v824 = vpop.f32.mrf.mxu0
        %v825 = vadd.f32 %v776, %v824
        %826 = vmatmul.bf16.gmra.mxu0 %v604
        %v827 = vpop.f32.mrf.mxu0
        %v828 = vadd.f32 %v779, %v827
        %v829 = vpop.f32.mrf.mxu0
        %v830 = vadd.f32 %v781, %v829
        %831 = vmatmul.bf16.gmra.mxu0 %v606
        %v832 = vpop.f32.mrf.mxu0
        %v833 = vadd.f32 %v784, %v832
        %v834 = vpop.f32.mrf.mxu0
        %v835 = vadd.f32 %v786, %v834
        %836 = vdwg.mxu0
        %v837 = vmax.f32 %v798, 0.0
        %v838 = vmax.f32 %v800, 0.0
        %v839 = vmax.f32 %v803, 0.0
        %v840 = vmax.f32 %v805, 0.0
        %v841 = vmax.f32 %v808, 0.0
        %v842 = vmax.f32 %v810, 0.0
        %v843 = vmax.f32 %v813, 0.0
        %v844 = vmax.f32 %v815, 0.0
        %v845 = vmax.f32 %v818, 0.0
        %v846 = vmax.f32 %v820, 0.0
        %v847 = vmax.f32 %v823, 0.0
        %v848 = vmax.f32 %v825, 0.0
        %v849 = vmax.f32 %v828, 0.0
        %v850 = vmax.f32 %v830, 0.0
        %v851 = vmax.f32 %v833, 0.0
        %v852 = vmax.f32 %v835, 0.0
        %853 = vst [vmem:[%s292] sm:$0xff] %v837
        %854 = vst [vmem:[%s292 + $0x8] sm:$0xff] %v838
        %855 = vst [vmem:[%s292 + $0x10] sm:$0xff] %v839
        %856 = vst [vmem:[%s292 + $0x18] sm:$0xff] %v840
        %857 = vst [vmem:[%s292 + $0x20] sm:$0xff] %v841
        %858 = vst [vmem:[%s292 + $0x28] sm:$0xff] %v842
        %859 = vst [vmem:[%s292 + $0x30] sm:$0xff] %v843
        %860 = vst [vmem:[%s292 + $0x38] sm:$0xff] %v844
        %861 = vst [vmem:[%s292 + $0x40] sm:$0xff] %v845
        %862 = vst [vmem:[%s292 + $0x48] sm:$0xff] %v846
        %863 = vst [vmem:[%s292 + $0x50] sm:$0xff] %v847
        %864 = vst [vmem:[%s292 + $0x58] sm:$0xff] %v848
        %865 = vst [vmem:[%s292 + $0x60] sm:$0xff] %v849
        %866 = vst [vmem:[%s292 + $0x68] sm:$0xff] %v850
        %867 = vst [vmem:[%s292 + $0x70] sm:$0xff] %v851
        %868 = vst [vmem:[%s292 + $0x78] sm:$0xff] %v852
        %s869 = sand.u32 %s142, 1
        %s870 = scalar_lea.sflag [#allocation4], %s869
        %s871 = sand.u32 %s142, 1
        %s872 = smul.addr %s871, 128
        %s873 = scalar_lea.vmem [#allocation10], %s872
        // Predicated region
        $region57: #{tpu_custom_call.1} parent=39 // pred_check
          %p874 = pneg %p152
        $region58: #{tpu_custom_call.1} parent=39 // pred_check_branch
          %876 = sbr.rel (%p874) target = $region60
        $region59: #{tpu_custom_call.1} parent=39 // pred_region
          %s877 = smul.u32 16, %s24
          %879 = vsyncadd %s870, 0
          %s880 = smul.addr %s877, 8
          %s881 = scalar_lea.hbm %s5, %s880
          %s882 = sshll.u32 %s873, 4
          %s883 = int_to_ptr.vmem [resolvable:$true] %s882
          %s884 = sshll.u32 %s881, 4
          %s885 = int_to_ptr.hbm [resolvable:$true] %s884
          %890 = dma.vmem_to_hbm [thread:$0]  %s883, 2048, %s885, %s870, 128, 128, 8
        $region60: #{tpu_custom_call.1} parent=39 // pred_fallthru
          _
      $region40: #{tpu_custom_call.1} parent=5 // pred_fallthru
        _
      %p891 = scmp.le.s32.totalorder 2, %s19
      // Predicated region
      $region61: #{tpu_custom_call.1} parent=5 // pred_check
        %p892 = pneg %p891
      $region62: #{tpu_custom_call.1} parent=5 // pred_check_branch
        %894 = sbr.rel (%p892) target = $region64
      $region63: #{tpu_custom_call.1} parent=5 // pred_region
        %s895 = ssub.s32 %s19, 2
        // Predicated region
        $region65: #{tpu_custom_call.1} parent=63 // pred_check
          %p896 = pneg %p158
        $region66: #{tpu_custom_call.1} parent=63 // pred_check_branch
          %898 = sbr.rel (%p896) target = $region68
        $region67: #{tpu_custom_call.1} parent=63 // pred_region
          %s899 = sand.u32 %s143, 1
          %s900 = scalar_lea.sflag [#allocation4], %s899
          %s901 = sand.u32 %s143, 1
          %s902 = smul.addr %s901, 128
          %s903 = scalar_lea.vmem [#allocation10], %s902
          %905 = dma.done %s900, 2048
        $region68: #{tpu_custom_call.1} parent=63 // pred_fallthru
          _
      $region64: #{tpu_custom_call.1} parent=5 // pred_fallthru
        _
    $region6: #{tpu_custom_call.1} parent=1 // loop_footer
      %s23 = sadd.s32 1, %s19
    $region7: #{tpu_custom_call.1} parent=1 // loop_footer_branch
      %18 = sbr.rel target = $region3
    $region8: #{tpu_custom_call.1} parent=1 // loop_exit
      _
    %906 = vsyncpa [#allocation3], 1
    %s907 = scalar_lea.sflag [#allocation3], 1
    %908 = vsyncpa %s907, 1
    %909 = vsyncpa [#allocation6], 1
    %910 = vsyncpa [#allocation9], 1
    %911 = vsyncpa [#allocation4], 1
    %s912 = scalar_lea.sflag [#allocation4], 1
    %913 = vsyncpa %s912, 1

</llo_original>
